<compile_context>
chip_gen: v7x
topology: tpu7x:2x2x1
jax: 0.10.0
libtpu: 0.0.40
codegen_flags: <defaults>
</compile_context>

<pallas_src>
import functools

import jax
import jax.numpy as jnp
from jax.experimental import pallas as pl
from jax.experimental.pallas import tpu as pltpu

LANE = 128


def _mha_kernel(x_ref, wq_ref, wk_ref, wv_ref, wo_ref, bo_ref, o_ref,
                k_scr, v_scr, *, num_heads, head_pad, scale, q_tile, seq_len):
    qi = pl.program_id(1)

    # ---- K/V projection: once per batch element (first query tile only). ----
    @pl.when(qi == 0)
    def _():
        xs = x_ref[...]                                             # (T, Ep) bf16
        k = jnp.dot(xs, wk_ref[...], preferred_element_type=jnp.float32)
        v = jnp.dot(xs, wv_ref[...], preferred_element_type=jnp.float32)
        k_scr[...] = jnp.transpose(
            k.reshape(seq_len, num_heads, head_pad), (1, 0, 2)).astype(k_scr.dtype)
        v_scr[...] = jnp.transpose(
            v.reshape(seq_len, num_heads, head_pad), (1, 0, 2)).astype(v_scr.dtype)

    # ---- Q projection for this tile's rows (sliced from the resident block). ----
    q_start = pl.multiple_of(qi * q_tile, q_tile)
    xq = x_ref[pl.ds(q_start, q_tile), :]                           # (TQ, Ep) bf16
    q = jnp.dot(xq, wq_ref[...], preferred_element_type=jnp.float32)
    # Scale folded into Q (cheap) rather than into the (H,TQ,T) scores.
    q_hd = jnp.transpose((q * scale).reshape(q_tile, num_heads, head_pad),
                         (1, 0, 2)).astype(k_scr.dtype)             # (H, TQ, Dp)

    k_hd = k_scr[...]                                               # (H, T, Dp)
    v_hd = v_scr[...]

    # ---- Head-batched attention scores + causal softmax. ----
    s = jnp.einsum('hqd,hkd->hqk', q_hd, k_hd,
                   preferred_element_type=jnp.float32)              # (H, TQ, T)
    row = jax.lax.broadcasted_iota(jnp.int32, (q_tile, seq_len), 0) + q_start
    col = jax.lax.broadcasted_iota(jnp.int32, (q_tile, seq_len), 1)
    s = jnp.where((row >= col)[None, :, :], s, -1e30)

    m = jnp.max(s, axis=-1, keepdims=True)
    p = jnp.exp(s - m)
    denom = jnp.sum(p, axis=-1, keepdims=True)                      # (H, TQ, 1)
    # TODO(synk): attention-prob dropout is eval-mode identity here.

    o_hd = jnp.einsum('hqk,hkd->hqd', p.astype(v_hd.dtype), v_hd,
                      preferred_element_type=jnp.float32)           # (H, TQ, Dp)
    # Softmax normalization folded into the PV epilogue; reciprocal on the EUP.
    o_hd = o_hd * pl.reciprocal(denom, approx=True)

    # ---- Merge heads and run ONE full-depth output projection. ----
    o_merged = jnp.transpose(o_hd, (1, 0, 2)).reshape(q_tile, num_heads * head_pad)
    out = jnp.dot(o_merged.astype(wo_ref.dtype), wo_ref[...],
                  preferred_element_type=jnp.float32)
    out = out + bo_ref[...]
    # TODO(synk): output dropout is eval-mode identity here.
    o_ref[...] = out.astype(o_ref.dtype)


def _pad_dims(embed_dim, num_heads):
    """Smallest (E_pad, D_pad) with E_pad a multiple of 128, divisible by H."""
    head = embed_dim // num_heads
    e_pad = LANE
    while e_pad < num_heads * head or e_pad % num_heads != 0:
        e_pad += LANE
    return e_pad, e_pad // num_heads


def multi_head_attention(x, wq, wk, wv, w_proj, b_proj, *, num_heads,
                         q_tile=None, compute_dtype=jnp.bfloat16):
    """x: (B, T, E) -> (B, T, E); eval-mode MultiHeadAttention forward."""
    B, T, E = x.shape
    assert E % num_heads == 0
    D = E // num_heads
    scale = float(E) ** -0.5            # PyTorch module: C ** (-0.5), C == EMBEDDING_DIM

    E_pad, D_pad = _pad_dims(E, num_heads)

    # Query-row tile; 256 matches the v6e/v7x 256-wide MXU M dimension.
    if q_tile is None:
        q_tile = T if T <= 256 else 256
    assert T % q_tile == 0, "sequence length must be a multiple of the query tile"
    n_q = T // q_tile

    # ---- Zero-pad weights/activations to lane-aligned head slabs (exact math). ----
    def pad_qkv_w(w):
        # (E, E): output columns laid out as H heads of D.
        wp = w.reshape(E, num_heads, D)
        wp = jnp.pad(wp, ((0, E_pad - E), (0, 0), (0, D_pad - D)))
        return wp.reshape(E_pad, E_pad).astype(compute_dtype)

    def pad_proj_w(w):
        # (E, E): input rows laid out as H heads of D (concat of head outputs).
        wp = w.reshape(num_heads, D, E)
        wp = jnp.pad(wp, ((0, 0), (0, D_pad - D), (0, E_pad - E)))
        return wp.reshape(E_pad, E_pad).astype(compute_dtype)

    wq_p = pad_qkv_w(wq)
    wk_p = pad_qkv_w(wk)
    wv_p = pad_qkv_w(wv)
    wo_p = pad_proj_w(w_proj)
    bo_p = jnp.pad(b_proj, (0, E_pad - E)).reshape(1, E_pad).astype(jnp.float32)
    x_p = jnp.pad(x, ((0, 0), (0, 0), (0, E_pad - E))).astype(compute_dtype)

    kernel = functools.partial(_mha_kernel, num_heads=num_heads, head_pad=D_pad,
                               scale=scale, q_tile=q_tile, seq_len=T)

    cdt_size = jnp.dtype(compute_dtype).itemsize
    out_size = jnp.dtype(x.dtype).itemsize

    # Corrected cost model: x is DMA'd once per batch element (block index is
    # constant over qi) and K/V are projected once per batch element.
    flops = int(B * (3 * 2 * T * E_pad * E_pad        # Q (over all tiles) + K + V
                     + 2 * 2 * T * T * E_pad          # scores + P@V (all heads)
                     + 2 * T * E_pad * E_pad))        # output projection
    bytes_accessed = int(B * T * E_pad * cdt_size                 # x, once per b
                         + 4 * E_pad * E_pad * cdt_size + E_pad * 4
                         + B * T * E_pad * out_size)              # output
    cost = pl.CostEstimate(flops=flops, transcendentals=int(B * num_heads * T * T),
                           bytes_accessed=bytes_accessed)

    # VMEM budget: double-buffered x/out blocks + resident weights + bf16 K/V
    # scratch + f32 score/prob intermediates.  Explicit limit (v5e default is
    # only 16 MiB), clamped to 64 MiB so v7x physical VMEM is never exceeded.
    vmem_est = (2 * T * E_pad * cdt_size
                + 2 * q_tile * E_pad * out_size
                + 2 * (4 * E_pad * E_pad * cdt_size + E_pad * 4)
                + 2 * T * E_pad * cdt_size                  # K/V scratch
                + 4 * num_heads * q_tile * T * 4            # scores / probs
                + 8 * q_tile * E_pad * 4)                   # q / merged / out
    vmem_limit = int(min(64 * 1024 * 1024, max(32 * 1024 * 1024, 2 * vmem_est)))

    out_p = pl.pallas_call(
        kernel,
        out_shape=jax.ShapeDtypeStruct((B, T, E_pad), x.dtype),
        grid_spec=pltpu.PrefetchScalarGridSpec(
            num_scalar_prefetch=0,
            grid=(B, n_q),
            in_specs=[
                pl.BlockSpec((None, T, E_pad), lambda b, qi: (b, 0, 0)),   # x (full seq, resident across qi)
                pl.BlockSpec((E_pad, E_pad), lambda b, qi: (0, 0)),        # Wq (resident)
                pl.BlockSpec((E_pad, E_pad), lambda b, qi: (0, 0)),        # Wk (resident)
                pl.BlockSpec((E_pad, E_pad), lambda b, qi: (0, 0)),        # Wv (resident)
                pl.BlockSpec((E_pad, E_pad), lambda b, qi: (0, 0)),        # W_proj (resident)
                pl.BlockSpec((1, E_pad), lambda b, qi: (0, 0)),            # b_proj (resident)
            ],
            out_specs=pl.BlockSpec((None, q_tile, E_pad), lambda b, qi: (b, qi, 0)),
            scratch_shapes=[
                pltpu.VMEM((num_heads, T, D_pad), compute_dtype),   # K cache (per batch elem)
                pltpu.VMEM((num_heads, T, D_pad), compute_dtype),   # V cache (per batch elem)
            ],
        ),
        compiler_params=pltpu.CompilerParams(
            dimension_semantics=("parallel", "arbitrary"),
            vmem_limit_bytes=vmem_limit),
        cost_estimate=cost,
    )(x_p, wq_p, wk_p, wv_p, wo_p, bo_p)

    return out_p[..., :E]


def init_params(key, embedding_dim):
    """Deterministic init mirroring nn.Linear defaults (uniform +/- 1/sqrt(fan_in)).

    Weights are stored transposed, i.e. (in, out), so the kernel computes x @ W.
    Wq/Wk/Wv are the per-head projections concatenated along the output axis.
    """
    E = embedding_dim
    lim = 1.0 / (E ** 0.5)
    k1, k2, k3, k4, k5 = jax.random.split(key, 5)
    wq = jax.random.uniform(k1, (E, E), jnp.float32, -lim, lim)
    wk = jax.random.uniform(k2, (E, E), jnp.float32, -lim, lim)
    wv = jax.random.uniform(k3, (E, E), jnp.float32, -lim, lim)
    w_proj = jax.random.uniform(k4, (E, E), jnp.float32, -lim, lim)
    b_proj = jax.random.uniform(k5, (E,), jnp.float32, -lim, lim)
    return wq, wk, wv, w_proj, b_proj


def reference_mha(x, wq, wk, wv, w_proj, b_proj, *, num_heads):
    """Pure-JAX f32 reference matching the PyTorch module in eval mode."""
    B, T, E = x.shape
    D = E // num_heads
    scale = float(E) ** -0.5
    q = x @ wq
    k = x @ wk
    v = x @ wv
    mask = jnp.tril(jnp.ones((T, T), bool))
    outs = []
    for h in range(num_heads):
        sl = slice(h * D, (h + 1) * D)
        s = (q[..., sl] @ jnp.swapaxes(k[..., sl], -1, -2)) * scale
        s = jnp.where(mask, s, -jnp.inf)
        p = jax.nn.softmax(s, axis=-1)
        outs.append(p @ v[..., sl])
    o = jnp.concatenate(outs, axis=-1)
    return o @ w_proj + b_proj


if __name__ == "__main__":
    # Synthetic hyperparameters consistent with the checkpoint-driven module.
    DROPOUT = 0.2            # eval mode => identity
    EMBEDDING_DIM = 32
    CONTEXT_LEN = 8
    NUM_HEAD = 4
    HEAD_SIZE = EMBEDDING_DIM // NUM_HEAD

    key = jax.random.PRNGKey(0)
    kp, kx = jax.random.split(key)

    B, T, E = 2, CONTEXT_LEN, EMBEDDING_DIM
    wq, wk, wv, w_proj, b_proj = init_params(kp, E)
    x = jax.random.normal(kx, (B, T, E), jnp.float32)

    out = multi_head_attention(x, wq, wk, wv, w_proj, b_proj, num_heads=NUM_HEAD)
    out = jax.block_until_ready(out)

    ref = reference_mha(x, wq, wk, wv, w_proj, b_proj, num_heads=NUM_HEAD)
    assert out.shape == (B, T, E)
    err = float(jnp.max(jnp.abs(out - ref)))
    # bf16 MXU operands + approx reciprocal => relaxed tolerance vs f32 reference.
    assert jnp.allclose(out, ref, atol=2e-2, rtol=2e-2), err

    print("KERNEL_OK")
</pallas_src>

<mosaic_0001>
module attributes {stable_mosaic.version = 11 : i64} {
  func.func @_mha_kernel(%arg0: i32, %arg1: i32, %arg2: memref<1x8x128xbf16, #tpu.memory_space<vmem>>, %arg3: memref<128x128xbf16, #tpu.memory_space<vmem>>, %arg4: memref<128x128xbf16, #tpu.memory_space<vmem>>, %arg5: memref<128x128xbf16, #tpu.memory_space<vmem>>, %arg6: memref<128x128xbf16, #tpu.memory_space<vmem>>, %arg7: memref<1x128xf32, #tpu.memory_space<vmem>>, %arg8: memref<1x8x128xf32, #tpu.memory_space<vmem>>, %arg9: memref<4x8x32xbf16, #tpu.memory_space<vmem>>, %arg10: memref<4x8x32xbf16, #tpu.memory_space<vmem>>) attributes {dimension_semantics = [#tpu.dimension_semantics<parallel>, #tpu.dimension_semantics<arbitrary>], iteration_bounds = array<i64: 2, 1>, scalar_prefetch = 0 : i64, scratch_operands = 2 : i64, tpu.core_type = #tpu.core_type<tc>, window_params = [{transform_indices = @transform_0, window_bounds = array<i64: 1, 8, 128>}, {pipeline_mode = #tpu.pipeline_mode<synchronous>, transform_indices = @transform_1, window_bounds = array<i64: 128, 128>}, {pipeline_mode = #tpu.pipeline_mode<synchronous>, transform_indices = @transform_2, window_bounds = array<i64: 128, 128>}, {pipeline_mode = #tpu.pipeline_mode<synchronous>, transform_indices = @transform_3, window_bounds = array<i64: 128, 128>}, {pipeline_mode = #tpu.pipeline_mode<synchronous>, transform_indices = @transform_4, window_bounds = array<i64: 128, 128>}, {pipeline_mode = #tpu.pipeline_mode<synchronous>, transform_indices = @transform_5, window_bounds = array<i64: 1, 128>}, {transform_indices = @transform_6, window_bounds = array<i64: 1, 8, 128>}]} {
    %c0_i32 = arith.constant 0 : i32
    %0 = arith.cmpi eq, %arg1, %c0_i32 : i32
    %1 = arith.extui %0 : i1 to i32
    %c0_i32_0 = arith.constant 0 : i32
    %2 = arith.cmpi ne, %1, %c0_i32_0 : i32
    scf.if %2 {
      %c0_24 = arith.constant 0 : index
      %c0_25 = arith.constant 0 : index
      %c0_26 = arith.constant 0 : index
      %51 = vector.load %arg2[%c0_24, %c0_25, %c0_26] : memref<1x8x128xbf16, #tpu.memory_space<vmem>>, vector<1x8x128xbf16>
      %52 = vector.shape_cast %51 : vector<1x8x128xbf16> to vector<8x128xbf16>
      %c0_27 = arith.constant 0 : index
      %c0_28 = arith.constant 0 : index
      %53 = vector.load %arg4[%c0_27, %c0_28] : memref<128x128xbf16, #tpu.memory_space<vmem>>, vector<128x128xbf16>
      %cst_29 = arith.constant dense<0.000000e+00> : vector<8x128xf32>
      %54 = tpu.matmul %52, %53, %cst_29 {dimension_numbers = #tpu.dot_dimension_numbers<[1], [0], [0], [1], [0, 0, 1, 1], [], []>} : vector<8x128xbf16>, vector<128x128xbf16>, vector<8x128xf32> -> vector<8x128xf32>
      %c0_30 = arith.constant 0 : index
      %c0_31 = arith.constant 0 : index
      %55 = vector.load %arg5[%c0_30, %c0_31] : memref<128x128xbf16, #tpu.memory_space<vmem>>, vector<128x128xbf16>
      %cst_32 = arith.constant dense<0.000000e+00> : vector<8x128xf32>
      %56 = tpu.matmul %52, %55, %cst_32 {dimension_numbers = #tpu.dot_dimension_numbers<[1], [0], [0], [1], [0, 0, 1, 1], [], []>} : vector<8x128xbf16>, vector<128x128xbf16>, vector<8x128xf32> -> vector<8x128xf32>
      %57 = vector.shape_cast %54 : vector<8x128xf32> to vector<8x4x32xf32>
      %58 = tpu.transpose %57, [1, 0, 2] : vector<8x4x32xf32> -> vector<4x8x32xf32>
      %59 = arith.truncf %58 : vector<4x8x32xf32> to vector<4x8x32xbf16>
      %c0_33 = arith.constant 0 : index
      %c0_34 = arith.constant 0 : index
      %c0_35 = arith.constant 0 : index
      %60 = vector.load %arg9[%c0_33, %c0_34, %c0_35] : memref<4x8x32xbf16, #tpu.memory_space<vmem>>, vector<4x8x32xbf16>
      tpu.vector_store %arg9[%c0_33, %c0_34, %c0_35], %59 {strides = array<i32>} : memref<4x8x32xbf16, #tpu.memory_space<vmem>>, vector<4x8x32xbf16>,
      %61 = vector.shape_cast %56 : vector<8x128xf32> to vector<8x4x32xf32>
      %62 = tpu.transpose %61, [1, 0, 2] : vector<8x4x32xf32> -> vector<4x8x32xf32>
      %63 = arith.truncf %62 : vector<4x8x32xf32> to vector<4x8x32xbf16>
      %c0_36 = arith.constant 0 : index
      %c0_37 = arith.constant 0 : index
      %c0_38 = arith.constant 0 : index
      %64 = vector.load %arg10[%c0_36, %c0_37, %c0_38] : memref<4x8x32xbf16, #tpu.memory_space<vmem>>, vector<4x8x32xbf16>
      tpu.vector_store %arg10[%c0_36, %c0_37, %c0_38], %63 {strides = array<i32>} : memref<4x8x32xbf16, #tpu.memory_space<vmem>>, vector<4x8x32xbf16>,
    } else {
    }
    %c8_i32 = arith.constant 8 : i32
    %3 = arith.muli %arg1, %c8_i32 : i32
    %4 = tpu.assume_multiple %3, 8 : i32
    %c0 = arith.constant 0 : index
    %5 = arith.index_cast %4 : i32 to index
    %c0_1 = arith.constant 0 : index
    %6 = vector.load %arg2[%c0, %5, %c0_1] : memref<1x8x128xbf16, #tpu.memory_space<vmem>>, vector<1x8x128xbf16>
    %7 = vector.shape_cast %6 : vector<1x8x128xbf16> to vector<8x128xbf16>
    %c0_2 = arith.constant 0 : index
    %c0_3 = arith.constant 0 : index
    %8 = vector.load %arg3[%c0_2, %c0_3] : memref<128x128xbf16, #tpu.memory_space<vmem>>, vector<128x128xbf16>
    %cst = arith.constant dense<0.000000e+00> : vector<8x128xf32>
    %9 = tpu.matmul %7, %8, %cst {dimension_numbers = #tpu.dot_dimension_numbers<[1], [0], [0], [1], [0, 0, 1, 1], [], []>} : vector<8x128xbf16>, vector<128x128xbf16>, vector<8x128xf32> -> vector<8x128xf32>
    %cst_4 = arith.constant 0.176776692 : f32
    %10 = vector.broadcast %cst_4 : f32 to vector<8x128xf32>
    %11 = arith.mulf %9, %10 : vector<8x128xf32>
    %12 = vector.shape_cast %11 : vector<8x128xf32> to vector<8x4x32xf32>
    %13 = tpu.transpose %12, [1, 0, 2] : vector<8x4x32xf32> -> vector<4x8x32xf32>
    %14 = arith.truncf %13 : vector<4x8x32xf32> to vector<4x8x32xbf16>
    %c0_5 = arith.constant 0 : index
    %c0_6 = arith.constant 0 : index
    %c0_7 = arith.constant 0 : index
    %15 = vector.load %arg9[%c0_5, %c0_6, %c0_7] : memref<4x8x32xbf16, #tpu.memory_space<vmem>>, vector<4x8x32xbf16>
    %c0_8 = arith.constant 0 : index
    %c0_9 = arith.constant 0 : index
    %c0_10 = arith.constant 0 : index
    %16 = vector.load %arg10[%c0_8, %c0_9, %c0_10] : memref<4x8x32xbf16, #tpu.memory_space<vmem>>, vector<4x8x32xbf16>
    "tpu.trace_start"() <{level = 10 : i32, message = "hqd,hkd->hqk"}> : () -> ()
    %cst_11 = arith.constant dense<0.000000e+00> : vector<4x8x8xf32>
    %17 = tpu.matmul %14, %15, %cst_11 {dimension_numbers = #tpu.dot_dimension_numbers<[2], [2], [1], [1], [0, 0, 0, 1, 1, 1], [0], [0]>} : vector<4x8x32xbf16>, vector<4x8x32xbf16>, vector<4x8x8xf32> -> vector<4x8x8xf32>
    "tpu.trace_stop"() : () -> ()
    %18 = tpu.iota {dimensions = array<i32: 0>} : vector<8x8xi32>
    %19 = vector.broadcast %4 : i32 to vector<8x8xi32>
    %20 = arith.addi %18, %19 : vector<8x8xi32>
    %21 = tpu.iota {dimensions = array<i32: 1>} : vector<8x8xi32>
    %22 = arith.cmpi sge, %20, %21 : vector<8x8xi32>
    %23 = vector.shape_cast %22 : vector<8x8xi1> to vector<1x8x8xi1>
    %cst_12 = arith.constant -1.000000e+30 : f32
    %24 = vector.shape_cast %23 : vector<1x8x8xi1> to vector<1x8x8xi1>
    %25 = vector.broadcast %24 : vector<1x8x8xi1> to vector<4x8x8xi1>
    %26 = vector.broadcast %cst_12 : f32 to vector<4x8x8xf32>
    %27 = arith.select %25, %17, %26 : vector<4x8x8xi1>, vector<4x8x8xf32>
    %cst_13 = arith.constant dense<0xFF800000> : vector<4x8xf32>
    %28 = vector.multi_reduction <maximumf>, %27, %cst_13 [2] : vector<4x8x8xf32> to vector<4x8xf32>
    %29 = vector.shape_cast %28 : vector<4x8xf32> to vector<4x8x1xf32>
    %30 = vector.broadcast %29 : vector<4x8x1xf32> to vector<4x8x8xf32>
    %31 = arith.subf %27, %30 : vector<4x8x8xf32>
    %32 = math.exp %31 : vector<4x8x8xf32>
    %cst_14 = arith.constant dense<0.000000e+00> : vector<4x8xf32>
    %33 = vector.multi_reduction <add>, %32, %cst_14 [2] : vector<4x8x8xf32> to vector<4x8xf32>
    %34 = vector.shape_cast %33 : vector<4x8xf32> to vector<4x8x1xf32>
    %35 = arith.truncf %32 : vector<4x8x8xf32> to vector<4x8x8xbf16>
    "tpu.trace_start"() <{level = 10 : i32, message = "hqk,hkd->hqd"}> : () -> ()
    %cst_15 = arith.constant dense<0.000000e+00> : vector<4x8x32xf32>
    %36 = tpu.matmul %35, %16, %cst_15 {dimension_numbers = #tpu.dot_dimension_numbers<[2], [1], [1], [2], [0, 0, 0, 1, 1, 2], [0], [0]>} : vector<4x8x8xbf16>, vector<4x8x32xbf16>, vector<4x8x32xf32> -> vector<4x8x32xf32>
    "tpu.trace_stop"() : () -> ()
    %37 = tpu.reciprocal %34 {approx = true} : vector<4x8x1xf32> -> vector<4x8x1xf32>
    %38 = vector.broadcast %37 : vector<4x8x1xf32> to vector<4x8x32xf32>
    %39 = arith.mulf %36, %38 : vector<4x8x32xf32>
    %40 = tpu.transpose %39, [1, 0, 2] : vector<4x8x32xf32> -> vector<8x4x32xf32>
    %41 = vector.shape_cast %40 : vector<8x4x32xf32> to vector<8x128xf32>
    %42 = arith.truncf %41 : vector<8x128xf32> to vector<8x128xbf16>
    %c0_16 = arith.constant 0 : index
    %c0_17 = arith.constant 0 : index
    %43 = vector.load %arg6[%c0_16, %c0_17] : memref<128x128xbf16, #tpu.memory_space<vmem>>, vector<128x128xbf16>
    %cst_18 = arith.constant dense<0.000000e+00> : vector<8x128xf32>
    %44 = tpu.matmul %42, %43, %cst_18 {dimension_numbers = #tpu.dot_dimension_numbers<[1], [0], [0], [1], [0, 0, 1, 1], [], []>} : vector<8x128xbf16>, vector<128x128xbf16>, vector<8x128xf32> -> vector<8x128xf32>
    %c0_19 = arith.constant 0 : index
    %c0_20 = arith.constant 0 : index
    %45 = vector.load %arg7[%c0_19, %c0_20] : memref<1x128xf32, #tpu.memory_space<vmem>>, vector<1x128xf32>
    %46 = vector.broadcast %45 : vector<1x128xf32> to vector<8x128xf32>
    %47 = arith.addf %44, %46 : vector<8x128xf32>
    %c0_21 = arith.constant 0 : index
    %c0_22 = arith.constant 0 : index
    %c0_23 = arith.constant 0 : index
    %48 = vector.load %arg8[%c0_21, %c0_22, %c0_23] : memref<1x8x128xf32, #tpu.memory_space<vmem>>, vector<1x8x128xf32>
    %49 = vector.shape_cast %48 : vector<1x8x128xf32> to vector<8x128xf32>
    %50 = vector.shape_cast %47 : vector<8x128xf32> to vector<1x8x128xf32>
    tpu.vector_store %arg8[%c0_21, %c0_22, %c0_23], %50 {strides = array<i32>} : memref<1x8x128xf32, #tpu.memory_space<vmem>>, vector<1x8x128xf32>,
    return
  }
  func.func @transform_0(%arg0: i32, %arg1: i32) -> (i32, i32, i32) {
    %c0_i32 = arith.constant 0 : i32
    %c0_i32_0 = arith.constant 0 : i32
    %c0_i32_1 = arith.constant 0 : i32
    return %arg0, %c0_i32, %c0_i32_0 : i32, i32, i32
  }
  func.func @transform_1(%arg0: i32, %arg1: i32) -> (i32, i32) {
    %c0_i32 = arith.constant 0 : i32
    %c0_i32_0 = arith.constant 0 : i32
    %c0_i32_1 = arith.constant 0 : i32
    return %c0_i32, %c0_i32_0 : i32, i32
  }
  func.func @transform_2(%arg0: i32, %arg1: i32) -> (i32, i32) {
    %c0_i32 = arith.constant 0 : i32
    %c0_i32_0 = arith.constant 0 : i32
    %c0_i32_1 = arith.constant 0 : i32
    return %c0_i32, %c0_i32_0 : i32, i32
  }
  func.func @transform_3(%arg0: i32, %arg1: i32) -> (i32, i32) {
    %c0_i32 = arith.constant 0 : i32
    %c0_i32_0 = arith.constant 0 : i32
    %c0_i32_1 = arith.constant 0 : i32
    return %c0_i32, %c0_i32_0 : i32, i32
  }
  func.func @transform_4(%arg0: i32, %arg1: i32) -> (i32, i32) {
    %c0_i32 = arith.constant 0 : i32
    %c0_i32_0 = arith.constant 0 : i32
    %c0_i32_1 = arith.constant 0 : i32
    return %c0_i32, %c0_i32_0 : i32, i32
  }
  func.func @transform_5(%arg0: i32, %arg1: i32) -> (i32, i32) {
    %c0_i32 = arith.constant 0 : i32
    %c0_i32_0 = arith.constant 0 : i32
    %c0_i32_1 = arith.constant 0 : i32
    return %c0_i32, %c0_i32_0 : i32, i32
  }
  func.func @transform_6(%arg0: i32, %arg1: i32) -> (i32, i32, i32) {
    %c0_i32 = arith.constant 0 : i32
    %c0_i32_0 = arith.constant 0 : i32
    return %arg0, %arg1, %c0_i32 : i32, i32, i32
  }
}

</mosaic_0001>

<llo_original>
// kernel: tpu_custom_call.1
$region0: #{tpu_custom_call.1}
  #allocation0 [shape = 'u32[]', space=smem, size = 0x4, offset = 0x4, fixed_abs, tag = 'smem constant byte address 0x4 - core index']
  #allocation1 [shape = 'u32[144,128]{1,0:T(1,128)}', space=vmem, size = 0x12000, scoped, tag = 'internal scratch']
  #allocation2 [shape = 'bf16[4,8,32]{2,1,0:T(8,128)(2,1)}', space=vmem, size = 0x2000, scoped, tag = 'scratch operand']
  #allocation3 [shape = 'bf16[4,8,32]{2,1,0:T(8,128)(2,1)}', space=vmem, size = 0x2000, scoped, tag = 'scratch operand']
  %s0 = inlined_call_operand.hbm [shape: bf16[2,8,128], index: 0, kind: input, shape index: {}]
  %s1 = inlined_call_operand.hbm [shape: bf16[128,128], index: 1, kind: input, shape index: {}]
  %s2 = inlined_call_operand.hbm [shape: bf16[128,128], index: 2, kind: input, shape index: {}]
  %s3 = inlined_call_operand.hbm [shape: bf16[128,128], index: 3, kind: input, shape index: {}]
  %s4 = inlined_call_operand.hbm [shape: bf16[128,128], index: 4, kind: input, shape index: {}]
  %s5 = inlined_call_operand.vmem [shape: f32[1,128], index: 5, kind: input, shape index: {}]
  %s6 = inlined_call_operand.hbm [shape: f32[2,8,128], index: 6, kind: output, shape index: {}]
  %s7 = sld [smem:[#allocation0]]
  $region81: #{tpu_custom_call.1} parent=0
    _
  %s9 = ssub.s32 1, %s7
  %s10 = scalar_select 0, %s9, %s7
  $region1: #{tpu_custom_call.1} parent=0
    #allocation4 [shape = 'u8[4096]{0}', space=vmem, size = 0x1000, scoped, tag = 'input window, operand 0']
    #allocation5 [shape = 's32[2]{0}', space=sflag, size = 0x8, scoped, tag = 'scoped memory for tpu_custom_call.1']
    #allocation6 [shape = 's32[2]{0}', space=sflag, size = 0x8, scoped, tag = 'scoped memory for tpu_custom_call.1']
    #allocation7 [shape = 'u8[32768]{0}', space=vmem, size = 0x8000, scoped, tag = 'input window, operand 1, single buffered']
    #allocation8 [shape = 's32[1]{0}', space=sflag, size = 0x4, scoped, tag = 'scoped memory for tpu_custom_call.1']
    #allocation9 [shape = 'u8[32768]{0}', space=vmem, size = 0x8000, scoped, tag = 'input window, operand 2, single buffered']
    #allocation10 [shape = 'u8[32768]{0}', space=vmem, size = 0x8000, scoped, tag = 'input window, operand 3, single buffered']
    #allocation11 [shape = 's32[1]{0}', space=sflag, size = 0x4, scoped, tag = 'scoped memory for tpu_custom_call.1']
    #allocation12 [shape = 'u8[32768]{0}', space=vmem, size = 0x8000, scoped, tag = 'input window, operand 4, single buffered']
    #allocation13 [shape = 'u8[8192]{0}', space=vmem, size = 0x2000, scoped, tag = 'output window, operand 0']
    %11 = vsyncpa [#allocation5], 0
    %s12 = scalar_lea.sflag [#allocation5], 1
    %13 = vsyncpa %s12, 0
    %14 = vsyncpa [#allocation8], 0
    %15 = vsyncpa [#allocation11], 0
    %16 = vsyncpa [#allocation6], 0
    %s17 = scalar_lea.sflag [#allocation6], 1
    %18 = vsyncpa %s17, 0
    loop: start=0, step=1, limit=4
    $region2: #{tpu_custom_call.1} parent=1 // loop_pre_header
      _
    $region3: #{tpu_custom_call.1} parent=1 // loop_header
      %s20 = sphi 0, %s24
      %p21 = scmp.ge.s32.totalorder %s20, 4
      %s27 = sphi 0, %s39
      %s28 = sphi 0, %s35
      %s29 = sphi 0, %s27
      %s30 = sphi 0, %s28
      %s31 = sphi 0, %s29
      %s32 = sphi 0, %s30
      %s42 = sphi 0, %s44
      %s45 = sphi 0, %s42
      %s46 = sphi 0, %s45
      %s62 = sphi 0, %s46
      %s66 = sphi 0, %s66
      %s68 = sphi 0, %s66
      %s69 = sphi 0, %s68
      %s83 = sphi 0, %s69
      %s87 = sphi 0, %s87
      %s89 = sphi 0, %s87
      %s90 = sphi 0, %s89
      %s104 = sphi 0, %s90
      %s108 = sphi 0, %s108
      %s110 = sphi 0, %s108
      %s111 = sphi 0, %s110
      %s125 = sphi 0, %s111
      %s129 = sphi 0, %s129
      %s131 = sphi 0, %s129
      %s132 = sphi 0, %s131
      %s146 = sphi 0, %s132
      %s150 = sphi 0, %s150
      %s152 = sphi 0, %s150
      %s153 = sphi 0, %s152
      %s167 = sphi 0, %s153
      %s175 = sphi 0, %s177
      %s178 = sphi 0, %s175
      %s179 = sphi 0, %s178
      %s195 = sphi 0, %s179
    $region4: #{tpu_custom_call.1} parent=1 // loop_header_branch
      %23 = sbr.rel (%p21) target = $region8
    $region5: #{tpu_custom_call.1} parent=1 // loop_body
      %s25 = ssub.s32 %s20, 1
      %s26 = ssub.s32 %s20, 2
      %s33 = sadd.s32 1, %s28
      %p34 = scmp.ge.s32.totalorder %s33, 1
      %s35 = scalar_select %p34, 0, %s33
      %s36 = sadd.s32 1, %s27
      %s37 = scalar_select %p34, %s36, %s27
      %p38 = scmp.ge.s32.totalorder %s37, 2
      %s39 = scalar_select %p38, 0, %s37
      %s40 = ssub.s32 %s27, %s39
      %p41 = scmp.eq.s32.totalorder %s40, 0
      %s43 = sadd.s32 %s42, 1
      %s44 = scalar_select %p41, %s42, %s43
      %p47 = pneg %p41
      %p48 = scmp.eq.s32.totalorder %s20, 1
      %p49 = por %p47, %p48
      %p50 = scmp.ne.s32.totalorder %s42, %s45
      %p51 = scmp.eq.s32.totalorder %s20, 0
      %p52 = por %p50, %p51
      %p53 = scmp.ne.s32.totalorder %s42, %s45
      %p54 = scmp.eq.s32.totalorder %s25, 1
      %p55 = por %p53, %p54
      %p56 = scmp.ne.s32.totalorder %s45, %s46
      %p57 = scmp.eq.s32.totalorder %s25, 0
      %p58 = por %p56, %p57
      %p59 = scmp.ne.s32.totalorder %s45, %s46
      %p60 = scmp.eq.s32.totalorder %s26, 1
      %p61 = por %p59, %p60
      %p63 = scmp.ne.s32.totalorder %s46, %s62
      %p64 = scmp.eq.s32.totalorder %s26, 0
      %p65 = por %p63, %p64
      %s67 = sadd.s32 %s66, 1
      %p70 = scmp.eq.s32.totalorder %s20, 1
      %p71 = scmp.ne.s32.totalorder %s66, %s68
      %p72 = scmp.eq.s32.totalorder %s20, 0
      %p73 = por %p71, %p72
      %p74 = scmp.ne.s32.totalorder %s66, %s68
      %p75 = scmp.eq.s32.totalorder %s25, 1
      %p76 = por %p74, %p75
      %p77 = scmp.ne.s32.totalorder %s68, %s69
      %p78 = scmp.eq.s32.totalorder %s25, 0
      %p79 = por %p77, %p78
      %p80 = scmp.ne.s32.totalorder %s68, %s69
      %p81 = scmp.eq.s32.totalorder %s26, 1
      %p82 = por %p80, %p81
      %p84 = scmp.ne.s32.totalorder %s69, %s83
      %p85 = scmp.eq.s32.totalorder %s26, 0
      %p86 = por %p84, %p85
      %s88 = sadd.s32 %s87, 1
      %p91 = scmp.eq.s32.totalorder %s20, 1
      %p92 = scmp.ne.s32.totalorder %s87, %s89
      %p93 = scmp.eq.s32.totalorder %s20, 0
      %p94 = por %p92, %p93
      %p95 = scmp.ne.s32.totalorder %s87, %s89
      %p96 = scmp.eq.s32.totalorder %s25, 1
      %p97 = por %p95, %p96
      %p98 = scmp.ne.s32.totalorder %s89, %s90
      %p99 = scmp.eq.s32.totalorder %s25, 0
      %p100 = por %p98, %p99
      %p101 = scmp.ne.s32.totalorder %s89, %s90
      %p102 = scmp.eq.s32.totalorder %s26, 1
      %p103 = por %p101, %p102
      %p105 = scmp.ne.s32.totalorder %s90, %s104
      %p106 = scmp.eq.s32.totalorder %s26, 0
      %p107 = por %p105, %p106
      %s109 = sadd.s32 %s108, 1
      %p112 = scmp.eq.s32.totalorder %s20, 1
      %p113 = scmp.ne.s32.totalorder %s108, %s110
      %p114 = scmp.eq.s32.totalorder %s20, 0
      %p115 = por %p113, %p114
      %p116 = scmp.ne.s32.totalorder %s108, %s110
      %p117 = scmp.eq.s32.totalorder %s25, 1
      %p118 = por %p116, %p117
      %p119 = scmp.ne.s32.totalorder %s110, %s111
      %p120 = scmp.eq.s32.totalorder %s25, 0
      %p121 = por %p119, %p120
      %p122 = scmp.ne.s32.totalorder %s110, %s111
      %p123 = scmp.eq.s32.totalorder %s26, 1
      %p124 = por %p122, %p123
      %p126 = scmp.ne.s32.totalorder %s111, %s125
      %p127 = scmp.eq.s32.totalorder %s26, 0
      %p128 = por %p126, %p127
      %s130 = sadd.s32 %s129, 1
      %p133 = scmp.eq.s32.totalorder %s20, 1
      %p134 = scmp.ne.s32.totalorder %s129, %s131
      %p135 = scmp.eq.s32.totalorder %s20, 0
      %p136 = por %p134, %p135
      %p137 = scmp.ne.s32.totalorder %s129, %s131
      %p138 = scmp.eq.s32.totalorder %s25, 1
      %p139 = por %p137, %p138
      %p140 = scmp.ne.s32.totalorder %s131, %s132
      %p141 = scmp.eq.s32.totalorder %s25, 0
      %p142 = por %p140, %p141
      %p143 = scmp.ne.s32.totalorder %s131, %s132
      %p144 = scmp.eq.s32.totalorder %s26, 1
      %p145 = por %p143, %p144
      %p147 = scmp.ne.s32.totalorder %s132, %s146
      %p148 = scmp.eq.s32.totalorder %s26, 0
      %p149 = por %p147, %p148
      %s151 = sadd.s32 %s150, 1
      %p154 = scmp.eq.s32.totalorder %s20, 1
      %p155 = scmp.ne.s32.totalorder %s150, %s152
      %p156 = scmp.eq.s32.totalorder %s20, 0
      %p157 = por %p155, %p156
      %p158 = scmp.ne.s32.totalorder %s150, %s152
      %p159 = scmp.eq.s32.totalorder %s25, 1
      %p160 = por %p158, %p159
      %p161 = scmp.ne.s32.totalorder %s152, %s153
      %p162 = scmp.eq.s32.totalorder %s25, 0
      %p163 = por %p161, %p162
      %p164 = scmp.ne.s32.totalorder %s152, %s153
      %p165 = scmp.eq.s32.totalorder %s26, 1
      %p166 = por %p164, %p165
      %p168 = scmp.ne.s32.totalorder %s153, %s167
      %p169 = scmp.eq.s32.totalorder %s26, 0
      %p170 = por %p168, %p169
      %s171 = ssub.s32 %s27, %s39
      %s172 = ssub.s32 %s28, %s35
      %s173 = sor.u32 %s171, %s172
      %p174 = scmp.eq.s32.totalorder %s173, 0
      %s176 = sadd.s32 %s175, 1
      %s177 = scalar_select %p174, %s175, %s176
      %p180 = pneg %p174
      %p181 = scmp.eq.s32.totalorder %s20, 1
      %p182 = por %p180, %p181
      %p183 = scmp.ne.s32.totalorder %s175, %s178
      %p184 = scmp.eq.s32.totalorder %s20, 0
      %p185 = por %p183, %p184
      %p186 = scmp.ne.s32.totalorder %s175, %s178
      %p187 = scmp.eq.s32.totalorder %s25, 1
      %p188 = por %p186, %p187
      %p189 = scmp.ne.s32.totalorder %s178, %s179
      %p190 = scmp.eq.s32.totalorder %s25, 0
      %p191 = por %p189, %p190
      %p192 = scmp.ne.s32.totalorder %s178, %s179
      %p193 = scmp.eq.s32.totalorder %s26, 1
      %p194 = por %p192, %p193
      %p196 = scmp.ne.s32.totalorder %s179, %s195
      %p197 = scmp.eq.s32.totalorder %s26, 0
      %p198 = por %p196, %p197
      %p199 = scmp.le.s32.totalorder 1, %s20
      %p200 = scmp.lt.s32.totalorder %s20, 3
      %p201 = pnand %p199, %p200
      %p202 = pneg %p201
      // Predicated region
      $region9: #{tpu_custom_call.1} parent=5 // pred_check
        _
      $region10: #{tpu_custom_call.1} parent=5 // pred_check_branch
        %204 = sbr.rel (%p201) target = $region12
      $region11: #{tpu_custom_call.1} parent=5 // pred_region
        %s205 = ssub.s32 %s20, 1
        // Predicated region
        $region13: #{tpu_custom_call.1} parent=11 // pred_check
          %p206 = pneg %p79
        $region14: #{tpu_custom_call.1} parent=11 // pred_check_branch
          %208 = sbr.rel (%p206) target = $region16
        $region15: #{tpu_custom_call.1} parent=11 // pred_region
          %s210 = ssub.s32 1024, 1024
          %211 = vsyncadd [#allocation8], %s210
          %s212 = sshll.u32 [#allocation7], 4
          %s213 = int_to_ptr.vmem [resolvable:$true] %s212
          %218 = dma.hbm_to_vmem [thread:$0]  %s1, 1024, %s213, [#allocation8], 64, 64, 4
        $region16: #{tpu_custom_call.1} parent=11 // pred_fallthru
          _
        // Predicated region
        $region17: #{tpu_custom_call.1} parent=11 // pred_check
          %p219 = pneg %p100
        $region18: #{tpu_custom_call.1} parent=11 // pred_check_branch
          %221 = sbr.rel (%p219) target = $region20
        $region19: #{tpu_custom_call.1} parent=11 // pred_region
          %s223 = ssub.s32 1024, 1024
          %224 = vsyncadd [#allocation8], %s223
          %s225 = sshll.u32 [#allocation9], 4
          %s226 = int_to_ptr.vmem [resolvable:$true] %s225
          %231 = dma.hbm_to_vmem [thread:$0]  %s2, 1024, %s226, [#allocation8], 64, 64, 4
        $region20: #{tpu_custom_call.1} parent=11 // pred_fallthru
          _
        // Predicated region
        $region21: #{tpu_custom_call.1} parent=11 // pred_check
          %p232 = pneg %p121
        $region22: #{tpu_custom_call.1} parent=11 // pred_check_branch
          %234 = sbr.rel (%p232) target = $region24
        $region23: #{tpu_custom_call.1} parent=11 // pred_region
          %s236 = ssub.s32 1024, 1024
          %237 = vsyncadd [#allocation11], %s236
          %s238 = sshll.u32 [#allocation10], 4
          %s239 = int_to_ptr.vmem [resolvable:$true] %s238
          %244 = dma.hbm_to_vmem [thread:$0]  %s3, 1024, %s239, [#allocation11], 64, 64, 4
        $region24: #{tpu_custom_call.1} parent=11 // pred_fallthru
          _
        // Predicated region
        $region25: #{tpu_custom_call.1} parent=11 // pred_check
          %p245 = pneg %p142
        $region26: #{tpu_custom_call.1} parent=11 // pred_check_branch
          %247 = sbr.rel (%p245) target = $region28
        $region27: #{tpu_custom_call.1} parent=11 // pred_region
          %s249 = ssub.s32 1024, 1024
          %250 = vsyncadd [#allocation11], %s249
          %s251 = sshll.u32 [#allocation12], 4
          %s252 = int_to_ptr.vmem [resolvable:$true] %s251
          %257 = dma.hbm_to_vmem [thread:$0]  %s4, 1024, %s252, [#allocation11], 64, 64, 4
        $region28: #{tpu_custom_call.1} parent=11 // pred_fallthru
          _
        // Predicated region
        $region29: #{tpu_custom_call.1} parent=11 // pred_check
          %p258 = pneg %p163
        $region30: #{tpu_custom_call.1} parent=11 // pred_check_branch
          %260 = sbr.rel (%p258) target = $region32
        $region31: #{tpu_custom_call.1} parent=11 // pred_region
          _
        $region32: #{tpu_custom_call.1} parent=11 // pred_fallthru
          _
      $region12: #{tpu_custom_call.1} parent=5 // pred_fallthru
        _
      %p261 = scmp.lt.s32.totalorder %s20, 2
      // Predicated region
      $region33: #{tpu_custom_call.1} parent=5 // pred_check
        %p262 = pneg %p261
      $region34: #{tpu_custom_call.1} parent=5 // pred_check_branch
        %264 = sbr.rel (%p262) target = $region36
      $region35: #{tpu_custom_call.1} parent=5 // pred_region
        // Predicated region
        $region37: #{tpu_custom_call.1} parent=35 // pred_check
          %p265 = pneg %p52
        $region38: #{tpu_custom_call.1} parent=35 // pred_check_branch
          %267 = sbr.rel (%p265) target = $region40
        $region39: #{tpu_custom_call.1} parent=35 // pred_region
          %s268 = sand.u32 %s42, 1
          %s269 = scalar_lea.sflag [#allocation5], %s268
          %s270 = sand.u32 %s42, 1
          %s271 = smul.addr %s270, 4
          %s272 = scalar_lea.vmem [#allocation4], %s271
          %s274 = ssub.s32 64, 64
          %275 = vsyncadd %s269, %s274
          %s276 = smul.addr %s27, 64
          %s277 = scalar_lea.hbm %s0, %s276
          %s279 = sshll.u32 %s272, 4
          %s280 = int_to_ptr.vmem [resolvable:$true] %s279
          %282 = dma.hbm_to_vmem [thread:$0]  %s277, 64, %s280, %s269
        $region40: #{tpu_custom_call.1} parent=35 // pred_fallthru
          _
      $region36: #{tpu_custom_call.1} parent=5 // pred_fallthru
        _
      %p283 = scmp.le.s32.totalorder 1, %s20
      %p284 = scmp.lt.s32.totalorder %s20, 3
      %p285 = pnand %p283, %p284
      %p286 = pneg %p285
      // Predicated region
      $region41: #{tpu_custom_call.1} parent=5 // pred_check
        _
      $region42: #{tpu_custom_call.1} parent=5 // pred_check_branch
        %288 = sbr.rel (%p285) target = $region44
      $region43: #{tpu_custom_call.1} parent=5 // pred_region
        %s289 = ssub.s32 %s20, 1
        %s290 = sand.u32 %s45, 1
        %s291 = scalar_lea.sflag [#allocation5], %s290
        %s292 = sand.u32 %s45, 1
        %s293 = smul.addr %s292, 4
        %s294 = scalar_lea.vmem [#allocation4], %s293
        // Predicated region
        $region45: #{tpu_custom_call.1} parent=43 // pred_check
          %p295 = pneg %p58
        $region46: #{tpu_custom_call.1} parent=43 // pred_check_branch
          %297 = sbr.rel (%p295) target = $region48
        $region47: #{tpu_custom_call.1} parent=43 // pred_region
          %298 = dma.done %s291, 64
        $region48: #{tpu_custom_call.1} parent=43 // pred_fallthru
          _
        // Predicated region
        $region49: #{tpu_custom_call.1} parent=43 // pred_check
          %p299 = pneg %p79
        $region50: #{tpu_custom_call.1} parent=43 // pred_check_branch
          %301 = sbr.rel (%p299) target = $region52
        $region51: #{tpu_custom_call.1} parent=43 // pred_region
          %302 = dma.done [#allocation8], 1024
        $region52: #{tpu_custom_call.1} parent=43 // pred_fallthru
          _
        // Predicated region
        $region53: #{tpu_custom_call.1} parent=43 // pred_check
          %p303 = pneg %p100
        $region54: #{tpu_custom_call.1} parent=43 // pred_check_branch
          %305 = sbr.rel (%p303) target = $region56
        $region55: #{tpu_custom_call.1} parent=43 // pred_region
          %306 = dma.done [#allocation8], 1024
        $region56: #{tpu_custom_call.1} parent=43 // pred_fallthru
          _
        // Predicated region
        $region57: #{tpu_custom_call.1} parent=43 // pred_check
          %p307 = pneg %p121
        $region58: #{tpu_custom_call.1} parent=43 // pred_check_branch
          %309 = sbr.rel (%p307) target = $region60
        $region59: #{tpu_custom_call.1} parent=43 // pred_region
          %310 = dma.done [#allocation11], 1024
        $region60: #{tpu_custom_call.1} parent=43 // pred_fallthru
          _
        // Predicated region
        $region61: #{tpu_custom_call.1} parent=43 // pred_check
          %p311 = pneg %p142
        $region62: #{tpu_custom_call.1} parent=43 // pred_check_branch
          %313 = sbr.rel (%p311) target = $region64
        $region63: #{tpu_custom_call.1} parent=43 // pred_region
          %314 = dma.done [#allocation11], 1024
        $region64: #{tpu_custom_call.1} parent=43 // pred_fallthru
          _
        %s315 = sand.u32 %s45, 1
        %s316 = scalar_lea.sflag [#allocation5], %s315
        %s317 = sand.u32 %s45, 1
        %s318 = smul.addr %s317, 4
        %s319 = scalar_lea.vmem [#allocation4], %s318
        %p320 = pneg %p58
        %p321 = pneg %p55
        %p322 = pneg %p79
        %p323 = pneg %p76
        %p324 = pneg %p100
        %p325 = pneg %p97
        %p326 = pneg %p121
        %p327 = pneg %p118
        %p328 = pneg %p142
        %p329 = pneg %p139
        %p330 = pneg %p163
        %p331 = pneg %p160
        %p332 = pneg %p191
        %p333 = pneg %p188
        %s334 = sand.u32 %s178, 1
        %s335 = scalar_lea.sflag [#allocation6], %s334
        %s336 = sand.u32 %s178, 1
        %s337 = smul.addr %s336, 8
        %s338 = scalar_lea.vmem [#allocation13], %s337
        %p340 = scmp.eq.s32.totalorder %s30, 0
        // Predicated region
        $region65: #{tpu_custom_call.1} parent=43 // pred_check
          %p341 = pneg %p340
        $region66: #{tpu_custom_call.1} parent=43 // pred_check_branch
          %343 = sbr.rel (%p341) target = $region68
        $region67: #{tpu_custom_call.1} parent=43 // pred_region
          %v344 = vld [vmem:[%s294] sm:$0xf]
          %v345 = vld [vmem:[#allocation9] sm:$0xf]
          %v346 = vld [vmem:[#allocation9 + $0x4] sm:$0xf]
          %v347 = vld [vmem:[#allocation9 + $0x8] sm:$0xf]
          %v348 = vld [vmem:[#allocation9 + $0xc] sm:$0xf]
          %v349 = vld [vmem:[#allocation9 + $0x10] sm:$0xf]
          %v350 = vld [vmem:[#allocation9 + $0x14] sm:$0xf]
          %v351 = vld [vmem:[#allocation9 + $0x18] sm:$0xf]
          %v352 = vld [vmem:[#allocation9 + $0x1c] sm:$0xf]
          %v353 = vld [vmem:[#allocation9 + $0x20] sm:$0xf]
          %v354 = vld [vmem:[#allocation9 + $0x24] sm:$0xf]
          %v355 = vld [vmem:[#allocation9 + $0x28] sm:$0xf]
          %v356 = vld [vmem:[#allocation9 + $0x2c] sm:$0xf]
          %v357 = vld [vmem:[#allocation9 + $0x30] sm:$0xf]
          %v358 = vld [vmem:[#allocation9 + $0x34] sm:$0xf]
          %v359 = vld [vmem:[#allocation9 + $0x38] sm:$0xf]
          %v360 = vld [vmem:[#allocation9 + $0x3c] sm:$0xf]
          %v377 = vunpack.c.l.b16 %v345
          %v378 = vunpack.c.l.b16 %v346
          %v379 = vunpack.c.l.b16 %v347
          %v380 = vunpack.c.l.b16 %v348
          %v381 = vunpack.c.l.b16 %v349
          %v382 = vunpack.c.l.b16 %v350
          %v383 = vunpack.c.l.b16 %v351
          %v384 = vunpack.c.l.b16 %v352
          %v385 = vunpack.c.l.b16 %v353
          %v386 = vunpack.c.l.b16 %v354
          %v387 = vunpack.c.l.b16 %v355
          %v388 = vunpack.c.l.b16 %v356
          %v389 = vunpack.c.l.b16 %v357
          %v390 = vunpack.c.l.b16 %v358
          %v391 = vunpack.c.l.b16 %v359
          %v392 = vunpack.c.l.b16 %v360
          %v393 = vpack.c.b16 %v378, %v377
          %v394 = vpack.c.b16 %v380, %v379
          %v395 = vpack.c.b16 %v382, %v381
          %v396 = vpack.c.b16 %v384, %v383
          %v397 = vpack.c.b16 %v386, %v385
          %v398 = vpack.c.b16 %v388, %v387
          %v399 = vpack.c.b16 %v390, %v389
          %v400 = vpack.c.b16 %v392, %v391
          %409 = vmatprep.subr.bf16.mxu0 0
          %410 = vmatpush1.bf16.msra.mxu0 %v393
          %411 = vmatprep.subr.bf16.mxu0 0
          %412 = vmatpush1.bf16.msra.mxu0 %v394
          %413 = vmatprep.subr.bf16.mxu0 0
          %414 = vmatpush1.bf16.msra.mxu0 %v395
          %415 = vmatprep.subr.bf16.mxu0 0
          %416 = vmatpush1.bf16.msra.mxu0 %v396
          %417 = vmatprep.subr.bf16.mxu0 0
          %418 = vmatpush1.bf16.msra.mxu0 %v397
          %419 = vmatprep.subr.bf16.mxu0 0
          %420 = vmatpush1.bf16.msra.mxu0 %v398
          %421 = vmatprep.subr.bf16.mxu0 0
          %422 = vmatpush1.bf16.msra.mxu0 %v399
          %423 = vmatprep.subr.bf16.mxu0 0
          %424 = vmatpush1.bf16.msra.mxu0 %v400
          %425 = vmatprep.subr.bf16.mxu0 0
          %426 = vmatpush1.bf16.msra.mxu0 0
          %427 = vmatprep.subr.bf16.mxu0 0
          %428 = vmatpush1.bf16.msra.mxu0 0
          %429 = vmatprep.subr.bf16.mxu0 0
          %430 = vmatpush1.bf16.msra.mxu0 0
          %431 = vmatprep.subr.bf16.mxu0 0
          %432 = vmatpush1.bf16.msra.mxu0 0
          %433 = vmatprep.subr.bf16.mxu0 0
          %434 = vmatpush1.bf16.msra.mxu0 0
          %435 = vmatprep.subr.bf16.mxu0 0
          %436 = vmatpush1.bf16.msra.mxu0 0
          %437 = vmatprep.subr.bf16.mxu0 0
          %438 = vmatpush1.bf16.msra.mxu0 0
          %439 = vmatprep.subr.bf16.mxu0 0
          %440 = vmatpush1.bf16.msra.mxu0 0
          %441 = vmatprep.mubr.bf16.mxu0 0
          %442 = vmatmul.mubr.bf16.gmra.mrb[0].mxu0 %v344
          %v443 = vpop.f32.mrb[0].mxu0
          %v444 = vadd.f32 0.0, %v443
          %v445 = vpop.f32.mrb[0].mxu0
          %v446 = vpop.f32.mrb[0].mxu0
          %v447 = vpop.f32.mrb[0].mxu0
          %448 = vdwg.mxu0
          %v449 = vld [vmem:[#allocation10] sm:$0xf]
          %v450 = vld [vmem:[#allocation10 + $0x4] sm:$0xf]
          %v451 = vld [vmem:[#allocation10 + $0x8] sm:$0xf]
          %v452 = vld [vmem:[#allocation10 + $0xc] sm:$0xf]
          %v453 = vld [vmem:[#allocation10 + $0x10] sm:$0xf]
          %v454 = vld [vmem:[#allocation10 + $0x14] sm:$0xf]
          %v455 = vld [vmem:[#allocation10 + $0x18] sm:$0xf]
          %v456 = vld [vmem:[#allocation10 + $0x1c] sm:$0xf]
          %v457 = vld [vmem:[#allocation10 + $0x20] sm:$0xf]
          %v458 = vld [vmem:[#allocation10 + $0x24] sm:$0xf]
          %v459 = vld [vmem:[#allocation10 + $0x28] sm:$0xf]
          %v460 = vld [vmem:[#allocation10 + $0x2c] sm:$0xf]
          %v461 = vld [vmem:[#allocation10 + $0x30] sm:$0xf]
          %v462 = vld [vmem:[#allocation10 + $0x34] sm:$0xf]
          %v463 = vld [vmem:[#allocation10 + $0x38] sm:$0xf]
          %v464 = vld [vmem:[#allocation10 + $0x3c] sm:$0xf]
          %v481 = vunpack.c.l.b16 %v449
          %v482 = vunpack.c.l.b16 %v450
          %v483 = vunpack.c.l.b16 %v451
          %v484 = vunpack.c.l.b16 %v452
          %v485 = vunpack.c.l.b16 %v453
          %v486 = vunpack.c.l.b16 %v454
          %v487 = vunpack.c.l.b16 %v455
          %v488 = vunpack.c.l.b16 %v456
          %v489 = vunpack.c.l.b16 %v457
          %v490 = vunpack.c.l.b16 %v458
          %v491 = vunpack.c.l.b16 %v459
          %v492 = vunpack.c.l.b16 %v460
          %v493 = vunpack.c.l.b16 %v461
          %v494 = vunpack.c.l.b16 %v462
          %v495 = vunpack.c.l.b16 %v463
          %v496 = vunpack.c.l.b16 %v464
          %v497 = vpack.c.b16 %v482, %v481
          %v498 = vpack.c.b16 %v484, %v483
          %v499 = vpack.c.b16 %v486, %v485
          %v500 = vpack.c.b16 %v488, %v487
          %v501 = vpack.c.b16 %v490, %v489
          %v502 = vpack.c.b16 %v492, %v491
          %v503 = vpack.c.b16 %v494, %v493
          %v504 = vpack.c.b16 %v496, %v495
          %513 = vmatprep.subr.bf16.mxu0 0
          %514 = vmatpush1.bf16.msra.mxu0 %v497
          %515 = vmatprep.subr.bf16.mxu0 0
          %516 = vmatpush1.bf16.msra.mxu0 %v498
          %517 = vmatprep.subr.bf16.mxu0 0
          %518 = vmatpush1.bf16.msra.mxu0 %v499
          %519 = vmatprep.subr.bf16.mxu0 0
          %520 = vmatpush1.bf16.msra.mxu0 %v500
          %521 = vmatprep.subr.bf16.mxu0 0
          %522 = vmatpush1.bf16.msra.mxu0 %v501
          %523 = vmatprep.subr.bf16.mxu0 0
          %524 = vmatpush1.bf16.msra.mxu0 %v502
          %525 = vmatprep.subr.bf16.mxu0 0
          %526 = vmatpush1.bf16.msra.mxu0 %v503
          %527 = vmatprep.subr.bf16.mxu0 0
          %528 = vmatpush1.bf16.msra.mxu0 %v504
          %529 = vmatprep.subr.bf16.mxu0 0
          %530 = vmatpush1.bf16.msra.mxu0 0
          %531 = vmatprep.subr.bf16.mxu0 0
          %532 = vmatpush1.bf16.msra.mxu0 0
          %533 = vmatprep.subr.bf16.mxu0 0
          %534 = vmatpush1.bf16.msra.mxu0 0
          %535 = vmatprep.subr.bf16.mxu0 0
          %536 = vmatpush1.bf16.msra.mxu0 0
          %537 = vmatprep.subr.bf16.mxu0 0
          %538 = vmatpush1.bf16.msra.mxu0 0
          %539 = vmatprep.subr.bf16.mxu0 0
          %540 = vmatpush1.bf16.msra.mxu0 0
          %541 = vmatprep.subr.bf16.mxu0 0
          %542 = vmatpush1.bf16.msra.mxu0 0
          %543 = vmatprep.subr.bf16.mxu0 0
          %544 = vmatpush1.bf16.msra.mxu0 0
          %545 = vmatprep.mubr.bf16.mxu0 0
          %546 = vmatmul.mubr.bf16.gmra.mrb[0].mxu0 %v344
          %v547 = vpop.f32.mrb[0].mxu0
          %v548 = vadd.f32 0.0, %v547
          %v549 = vpop.f32.mrb[0].mxu0
          %v550 = vpop.f32.mrb[0].mxu0
          %v551 = vpop.f32.mrb[0].mxu0
          %552 = vdwg.mxu0
          %554 = vrot.lane.b32.xlu0 %v444, 96
          %v555 = vpop.permute.xlu0 %554
          %557 = vrot.lane.b32.xlu0 %v444, 64
          %v558 = vpop.permute.xlu0 %557
          %560 = vrot.lane.b32.xlu0 %v444, 32
          %v561 = vpop.permute.xlu0 %560
          %v563 = vcombine.low %v444, %v558
          %v564 = vcombine.high %v444, %v558
          %v566 = vunpack.c.l.s4 1983009808
          %v567 = vunpack.c.0.s8 %v566
          %v568 = vlaneseq
          %v569 = vshrl.u32 %v568, 7
          %v570 = vsub.s32 %v567, %v569
          %v571 = vrot.slane %v563, %v570
          %v573 = vunpack.c.l.s4 1983009808
          %v574 = vunpack.c.0.s8 %v573
          %v575 = vlaneseq
          %v576 = vshrl.u32 %v575, 7
          %v577 = vsub.s32 %v574, %v576
          %v578 = vrot.slane %v564, %v577
          %v579 = vcombine.low %v555, %v561
          %v580 = vcombine.high %v555, %v561
          %v582 = vunpack.c.l.s4 1983009808
          %v583 = vunpack.c.0.s8 %v582
          %v584 = vlaneseq
          %v585 = vshrl.u32 %v584, 7
          %v586 = vsub.s32 %v583, %v585
          %v587 = vrot.slane %v579, %v586
          %v589 = vunpack.c.l.s4 1983009808
          %v590 = vunpack.c.0.s8 %v589
          %v591 = vlaneseq
          %v592 = vshrl.u32 %v591, 7
          %v593 = vsub.s32 %v590, %v592
          %v594 = vrot.slane %v580, %v593
          %v595 = vcombine.low %v571, %v587
          %v596 = vcombine.high %v571, %v587
          %v598 = vunpack.c.l.s4 1934713408
          %v599 = vunpack.c.0.s8 %v598
          %v600 = vlaneseq
          %v601 = vshrl.u32 %v600, 7
          %v602 = vsub.s32 %v599, %v601
          %v603 = vrot.slane %v595, %v602
          %v605 = vunpack.c.l.s4 1934713408
          %v606 = vunpack.c.0.s8 %v605
          %v607 = vlaneseq
          %v608 = vshrl.u32 %v607, 7
          %v609 = vsub.s32 %v606, %v608
          %v610 = vrot.slane %v596, %v609
          %v611 = vcombine.low %v578, %v594
          %v612 = vcombine.high %v578, %v594
          %v614 = vunpack.c.l.s4 1934713408
          %v615 = vunpack.c.0.s8 %v614
          %v616 = vlaneseq
          %v617 = vshrl.u32 %v616, 7
          %v618 = vsub.s32 %v615, %v617
          %v619 = vrot.slane %v611, %v618
          %v621 = vunpack.c.l.s4 1934713408
          %v622 = vunpack.c.0.s8 %v621
          %v623 = vlaneseq
          %v624 = vshrl.u32 %v623, 7
          %v625 = vsub.s32 %v622, %v624
          %v626 = vrot.slane %v612, %v625
          %v627 = vcombine.high %v603, 0.0
          %v628 = vcombine.high %v610, 0.0
          %v629 = vcombine.high %v619, 0.0
          %v630 = vcombine.high %v626, 0.0
          %v631 = vcombine.low %v603, %v610
          %v633 = vunpack.c.l.s4 1983009808
          %v634 = vunpack.c.0.s8 %v633
          %v635 = vlaneseq
          %v636 = vshrl.u32 %v635, 7
          %v637 = vsub.s32 %v634, %v636
          %v638 = vrot.slane %v631, %v637
          %v639 = vcombine.low %v627, %v628
          %v641 = vunpack.c.l.s4 1983009808
          %v642 = vunpack.c.0.s8 %v641
          %v643 = vlaneseq
          %v644 = vshrl.u32 %v643, 7
          %v645 = vsub.s32 %v642, %v644
          %v646 = vrot.slane %v639, %v645
          %v647 = vcombine.low %v619, %v626
          %v649 = vunpack.c.l.s4 1983009808
          %v650 = vunpack.c.0.s8 %v649
          %v651 = vlaneseq
          %v652 = vshrl.u32 %v651, 7
          %v653 = vsub.s32 %v650, %v652
          %v654 = vrot.slane %v647, %v653
          %v655 = vcombine.low %v629, %v630
          %v657 = vunpack.c.l.s4 1983009808
          %v658 = vunpack.c.0.s8 %v657
          %v659 = vlaneseq
          %v660 = vshrl.u32 %v659, 7
          %v661 = vsub.s32 %v658, %v660
          %v662 = vrot.slane %v655, %v661
          %v663 = vcombine.low %v638, %v646
          %v664 = vcombine.high %v638, %v646
          %v666 = vunpack.c.l.s4 1934713408
          %v667 = vunpack.c.0.s8 %v666
          %v668 = vlaneseq
          %v669 = vshrl.u32 %v668, 7
          %v670 = vsub.s32 %v667, %v669
          %v671 = vrot.slane %v663, %v670
          %v673 = vunpack.c.l.s4 1934713408
          %v674 = vunpack.c.0.s8 %v673
          %v675 = vlaneseq
          %v676 = vshrl.u32 %v675, 7
          %v677 = vsub.s32 %v674, %v676
          %v678 = vrot.slane %v664, %v677
          %v679 = vcombine.low %v654, %v662
          %v680 = vcombine.high %v654, %v662
          %v682 = vunpack.c.l.s4 1934713408
          %v683 = vunpack.c.0.s8 %v682
          %v684 = vlaneseq
          %v685 = vshrl.u32 %v684, 7
          %v686 = vsub.s32 %v683, %v685
          %v687 = vrot.slane %v679, %v686
          %v689 = vunpack.c.l.s4 1934713408
          %v690 = vunpack.c.0.s8 %v689
          %v691 = vlaneseq
          %v692 = vshrl.u32 %v691, 7
          %v693 = vsub.s32 %v690, %v692
          %v694 = vrot.slane %v680, %v693
          %v695 = vcombine.low %v671, %v687
          %v696 = vcombine.high %v671, %v687
          %v697 = vcombine.low %v678, %v694
          %v698 = vcombine.high %v678, %v694
          %v699 = vpack.c.bf16 %v695, %v695
          %v700 = vpack.c.bf16 %v696, %v696
          %v701 = vpack.c.bf16 %v697, %v697
          %v702 = vpack.c.bf16 %v698, %v698
          %vm703 = vcmask 257024
          %704 = vst.msk [vmem:[#allocation2] sm:$0xf] %vm703, %v699
          %705 = vst.msk [vmem:[#allocation2 + $0x4] sm:$0xf] %vm703, %v700
          %706 = vst.msk [vmem:[#allocation2 + $0x8] sm:$0xf] %vm703, %v701
          %707 = vst.msk [vmem:[#allocation2 + $0xc] sm:$0xf] %vm703, %v702
          %709 = vrot.lane.b32.xlu0 %v548, 96
          %v710 = vpop.permute.xlu0 %709
          %712 = vrot.lane.b32.xlu0 %v548, 64
          %v713 = vpop.permute.xlu0 %712
          %715 = vrot.lane.b32.xlu0 %v548, 32
          %v716 = vpop.permute.xlu0 %715
          %v718 = vcombine.low %v548, %v713
          %v719 = vcombine.high %v548, %v713
          %v721 = vunpack.c.l.s4 1983009808
          %v722 = vunpack.c.0.s8 %v721
          %v723 = vlaneseq
          %v724 = vshrl.u32 %v723, 7
          %v725 = vsub.s32 %v722, %v724
          %v726 = vrot.slane %v718, %v725
          %v728 = vunpack.c.l.s4 1983009808
          %v729 = vunpack.c.0.s8 %v728
          %v730 = vlaneseq
          %v731 = vshrl.u32 %v730, 7
          %v732 = vsub.s32 %v729, %v731
          %v733 = vrot.slane %v719, %v732
          %v734 = vcombine.low %v710, %v716
          %v735 = vcombine.high %v710, %v716
          %v737 = vunpack.c.l.s4 1983009808
          %v738 = vunpack.c.0.s8 %v737
          %v739 = vlaneseq
          %v740 = vshrl.u32 %v739, 7
          %v741 = vsub.s32 %v738, %v740
          %v742 = vrot.slane %v734, %v741
          %v744 = vunpack.c.l.s4 1983009808
          %v745 = vunpack.c.0.s8 %v744
          %v746 = vlaneseq
          %v747 = vshrl.u32 %v746, 7
          %v748 = vsub.s32 %v745, %v747
          %v749 = vrot.slane %v735, %v748
          %v750 = vcombine.low %v726, %v742
          %v751 = vcombine.high %v726, %v742
          %v753 = vunpack.c.l.s4 1934713408
          %v754 = vunpack.c.0.s8 %v753
          %v755 = vlaneseq
          %v756 = vshrl.u32 %v755, 7
          %v757 = vsub.s32 %v754, %v756
          %v758 = vrot.slane %v750, %v757
          %v760 = vunpack.c.l.s4 1934713408
          %v761 = vunpack.c.0.s8 %v760
          %v762 = vlaneseq
          %v763 = vshrl.u32 %v762, 7
          %v764 = vsub.s32 %v761, %v763
          %v765 = vrot.slane %v751, %v764
          %v766 = vcombine.low %v733, %v749
          %v767 = vcombine.high %v733, %v749
          %v769 = vunpack.c.l.s4 1934713408
          %v770 = vunpack.c.0.s8 %v769
          %v771 = vlaneseq
          %v772 = vshrl.u32 %v771, 7
          %v773 = vsub.s32 %v770, %v772
          %v774 = vrot.slane %v766, %v773
          %v776 = vunpack.c.l.s4 1934713408
          %v777 = vunpack.c.0.s8 %v776
          %v778 = vlaneseq
          %v779 = vshrl.u32 %v778, 7
          %v780 = vsub.s32 %v777, %v779
          %v781 = vrot.slane %v767, %v780
          %v782 = vcombine.high %v758, 0.0
          %v783 = vcombine.high %v765, 0.0
          %v784 = vcombine.high %v774, 0.0
          %v785 = vcombine.high %v781, 0.0
          %v786 = vcombine.low %v758, %v765
          %v788 = vunpack.c.l.s4 1983009808
          %v789 = vunpack.c.0.s8 %v788
          %v790 = vlaneseq
          %v791 = vshrl.u32 %v790, 7
          %v792 = vsub.s32 %v789, %v791
          %v793 = vrot.slane %v786, %v792
          %v794 = vcombine.low %v782, %v783
          %v796 = vunpack.c.l.s4 1983009808
          %v797 = vunpack.c.0.s8 %v796
          %v798 = vlaneseq
          %v799 = vshrl.u32 %v798, 7
          %v800 = vsub.s32 %v797, %v799
          %v801 = vrot.slane %v794, %v800
          %v802 = vcombine.low %v774, %v781
          %v804 = vunpack.c.l.s4 1983009808
          %v805 = vunpack.c.0.s8 %v804
          %v806 = vlaneseq
          %v807 = vshrl.u32 %v806, 7
          %v808 = vsub.s32 %v805, %v807
          %v809 = vrot.slane %v802, %v808
          %v810 = vcombine.low %v784, %v785
          %v812 = vunpack.c.l.s4 1983009808
          %v813 = vunpack.c.0.s8 %v812
          %v814 = vlaneseq
          %v815 = vshrl.u32 %v814, 7
          %v816 = vsub.s32 %v813, %v815
          %v817 = vrot.slane %v810, %v816
          %v818 = vcombine.low %v793, %v801
          %v819 = vcombine.high %v793, %v801
          %v821 = vunpack.c.l.s4 1934713408
          %v822 = vunpack.c.0.s8 %v821
          %v823 = vlaneseq
          %v824 = vshrl.u32 %v823, 7
          %v825 = vsub.s32 %v822, %v824
          %v826 = vrot.slane %v818, %v825
          %v828 = vunpack.c.l.s4 1934713408
          %v829 = vunpack.c.0.s8 %v828
          %v830 = vlaneseq
          %v831 = vshrl.u32 %v830, 7
          %v832 = vsub.s32 %v829, %v831
          %v833 = vrot.slane %v819, %v832
          %v834 = vcombine.low %v809, %v817
          %v835 = vcombine.high %v809, %v817
          %v837 = vunpack.c.l.s4 1934713408
          %v838 = vunpack.c.0.s8 %v837
          %v839 = vlaneseq
          %v840 = vshrl.u32 %v839, 7
          %v841 = vsub.s32 %v838, %v840
          %v842 = vrot.slane %v834, %v841
          %v844 = vunpack.c.l.s4 1934713408
          %v845 = vunpack.c.0.s8 %v844
          %v846 = vlaneseq
          %v847 = vshrl.u32 %v846, 7
          %v848 = vsub.s32 %v845, %v847
          %v849 = vrot.slane %v835, %v848
          %v850 = vcombine.low %v826, %v842
          %v851 = vcombine.high %v826, %v842
          %v852 = vcombine.low %v833, %v849
          %v853 = vcombine.high %v833, %v849
          %v854 = vpack.c.bf16 %v850, %v850
          %v855 = vpack.c.bf16 %v851, %v851
          %v856 = vpack.c.bf16 %v852, %v852
          %v857 = vpack.c.bf16 %v853, %v853
          %858 = vst.msk [vmem:[#allocation3] sm:$0xf] %vm703, %v854
          %859 = vst.msk [vmem:[#allocation3 + $0x4] sm:$0xf] %vm703, %v855
          %860 = vst.msk [vmem:[#allocation3 + $0x8] sm:$0xf] %vm703, %v856
          %861 = vst.msk [vmem:[#allocation3 + $0xc] sm:$0xf] %vm703, %v857
        $region68: #{tpu_custom_call.1} parent=43 // pred_fallthru
          _
        %s862 = smul.u32 %s30, 8
        %s863 = sshra.s32 %s862, 3
        %s864 = sand.u32 %s862, 7
        %s865 = smul.addr %s863, 4
        %s866 = scalar_lea.vmem %s294, %s865 [#allocation4]
        %v867 = vld [vmem:[%s866] sm:$0xf]
        %v868 = vld [vmem:[#allocation7] sm:$0xf]
        %v869 = vld [vmem:[#allocation7 + $0x4] sm:$0xf]
        %v870 = vld [vmem:[#allocation7 + $0x8] sm:$0xf]
        %v871 = vld [vmem:[#allocation7 + $0xc] sm:$0xf]
        %v872 = vld [vmem:[#allocation7 + $0x10] sm:$0xf]
        %v873 = vld [vmem:[#allocation7 + $0x14] sm:$0xf]
        %v874 = vld [vmem:[#allocation7 + $0x18] sm:$0xf]
        %v875 = vld [vmem:[#allocation7 + $0x1c] sm:$0xf]
        %v876 = vld [vmem:[#allocation7 + $0x20] sm:$0xf]
        %v877 = vld [vmem:[#allocation7 + $0x24] sm:$0xf]
        %v878 = vld [vmem:[#allocation7 + $0x28] sm:$0xf]
        %v879 = vld [vmem:[#allocation7 + $0x2c] sm:$0xf]
        %v880 = vld [vmem:[#allocation7 + $0x30] sm:$0xf]
        %v881 = vld [vmem:[#allocation7 + $0x34] sm:$0xf]
        %v882 = vld [vmem:[#allocation7 + $0x38] sm:$0xf]
        %v883 = vld [vmem:[#allocation7 + $0x3c] sm:$0xf]
        %v900 = vunpack.c.l.b16 %v868
        %v901 = vunpack.c.l.b16 %v869
        %v902 = vunpack.c.l.b16 %v870
        %v903 = vunpack.c.l.b16 %v871
        %v904 = vunpack.c.l.b16 %v872
        %v905 = vunpack.c.l.b16 %v873
        %v906 = vunpack.c.l.b16 %v874
        %v907 = vunpack.c.l.b16 %v875
        %v908 = vunpack.c.l.b16 %v876
        %v909 = vunpack.c.l.b16 %v877
        %v910 = vunpack.c.l.b16 %v878
        %v911 = vunpack.c.l.b16 %v879
        %v912 = vunpack.c.l.b16 %v880
        %v913 = vunpack.c.l.b16 %v881
        %v914 = vunpack.c.l.b16 %v882
        %v915 = vunpack.c.l.b16 %v883
        %v916 = vpack.c.b16 %v901, %v900
        %v917 = vpack.c.b16 %v903, %v902
        %v918 = vpack.c.b16 %v905, %v904
        %v919 = vpack.c.b16 %v907, %v906
        %v920 = vpack.c.b16 %v909, %v908
        %v921 = vpack.c.b16 %v911, %v910
        %v922 = vpack.c.b16 %v913, %v912
        %v923 = vpack.c.b16 %v915, %v914
        %932 = vmatprep.subr.bf16.mxu0 0
        %933 = vmatpush1.bf16.msra.mxu0 %v916
        %934 = vmatprep.subr.bf16.mxu0 0
        %935 = vmatpush1.bf16.msra.mxu0 %v917
        %936 = vmatprep.subr.bf16.mxu0 0
        %937 = vmatpush1.bf16.msra.mxu0 %v918
        %938 = vmatprep.subr.bf16.mxu0 0
        %939 = vmatpush1.bf16.msra.mxu0 %v919
        %940 = vmatprep.subr.bf16.mxu0 0
        %941 = vmatpush1.bf16.msra.mxu0 %v920
        %942 = vmatprep.subr.bf16.mxu0 0
        %943 = vmatpush1.bf16.msra.mxu0 %v921
        %944 = vmatprep.subr.bf16.mxu0 0
        %945 = vmatpush1.bf16.msra.mxu0 %v922
        %946 = vmatprep.subr.bf16.mxu0 0
        %947 = vmatpush1.bf16.msra.mxu0 %v923
        %948 = vmatprep.subr.bf16.mxu0 0
        %949 = vmatpush1.bf16.msra.mxu0 0
        %950 = vmatprep.subr.bf16.mxu0 0
        %951 = vmatpush1.bf16.msra.mxu0 0
        %952 = vmatprep.subr.bf16.mxu0 0
        %953 = vmatpush1.bf16.msra.mxu0 0
        %954 = vmatprep.subr.bf16.mxu0 0
        %955 = vmatpush1.bf16.msra.mxu0 0
        %956 = vmatprep.subr.bf16.mxu0 0
        %957 = vmatpush1.bf16.msra.mxu0 0
        %958 = vmatprep.subr.bf16.mxu0 0
        %959 = vmatpush1.bf16.msra.mxu0 0
        %960 = vmatprep.subr.bf16.mxu0 0
        %961 = vmatpush1.bf16.msra.mxu0 0
        %962 = vmatprep.subr.bf16.mxu0 0
        %963 = vmatpush1.bf16.msra.mxu0 0
        %964 = vmatprep.mubr.bf16.mxu0 0
        %965 = vmatmul.mubr.bf16.gmra.mrb[0].mxu0 %v867
        %v966 = vpop.f32.mrb[0].mxu0
        %v967 = vadd.f32 0.0, %v966
        %v968 = vpop.f32.mrb[0].mxu0
        %v969 = vpop.f32.mrb[0].mxu0
        %v970 = vpop.f32.mrb[0].mxu0
        %971 = vdwg.mxu0
        %v972 = vmul.f32 %v967, 0.17677669
        %974 = vrot.lane.b32.xlu0 %v972, 96
        %v975 = vpop.permute.xlu0 %974
        %977 = vrot.lane.b32.xlu0 %v972, 64
        %v978 = vpop.permute.xlu0 %977
        %980 = vrot.lane.b32.xlu0 %v972, 32
        %v981 = vpop.permute.xlu0 %980
        %v983 = vcombine.low %v972, %v978
        %v984 = vcombine.high %v972, %v978
        %v986 = vunpack.c.l.s4 1983009808
        %v987 = vunpack.c.0.s8 %v986
        %v988 = vlaneseq
        %v989 = vshrl.u32 %v988, 7
        %v990 = vsub.s32 %v987, %v989
        %v991 = vrot.slane %v983, %v990
        %v993 = vunpack.c.l.s4 1983009808
        %v994 = vunpack.c.0.s8 %v993
        %v995 = vlaneseq
        %v996 = vshrl.u32 %v995, 7
        %v997 = vsub.s32 %v994, %v996
        %v998 = vrot.slane %v984, %v997
        %v999 = vcombine.low %v975, %v981
        %v1000 = vcombine.high %v975, %v981
        %v1002 = vunpack.c.l.s4 1983009808
        %v1003 = vunpack.c.0.s8 %v1002
        %v1004 = vlaneseq
        %v1005 = vshrl.u32 %v1004, 7
        %v1006 = vsub.s32 %v1003, %v1005
        %v1007 = vrot.slane %v999, %v1006
        %v1009 = vunpack.c.l.s4 1983009808
        %v1010 = vunpack.c.0.s8 %v1009
        %v1011 = vlaneseq
        %v1012 = vshrl.u32 %v1011, 7
        %v1013 = vsub.s32 %v1010, %v1012
        %v1014 = vrot.slane %v1000, %v1013
        %v1015 = vcombine.low %v991, %v1007
        %v1016 = vcombine.high %v991, %v1007
        %v1018 = vunpack.c.l.s4 1934713408
        %v1019 = vunpack.c.0.s8 %v1018
        %v1020 = vlaneseq
        %v1021 = vshrl.u32 %v1020, 7
        %v1022 = vsub.s32 %v1019, %v1021
        %v1023 = vrot.slane %v1015, %v1022
        %v1025 = vunpack.c.l.s4 1934713408
        %v1026 = vunpack.c.0.s8 %v1025
        %v1027 = vlaneseq
        %v1028 = vshrl.u32 %v1027, 7
        %v1029 = vsub.s32 %v1026, %v1028
        %v1030 = vrot.slane %v1016, %v1029
        %v1031 = vcombine.low %v998, %v1014
        %v1032 = vcombine.high %v998, %v1014
        %v1034 = vunpack.c.l.s4 1934713408
        %v1035 = vunpack.c.0.s8 %v1034
        %v1036 = vlaneseq
        %v1037 = vshrl.u32 %v1036, 7
        %v1038 = vsub.s32 %v1035, %v1037
        %v1039 = vrot.slane %v1031, %v1038
        %v1041 = vunpack.c.l.s4 1934713408
        %v1042 = vunpack.c.0.s8 %v1041
        %v1043 = vlaneseq
        %v1044 = vshrl.u32 %v1043, 7
        %v1045 = vsub.s32 %v1042, %v1044
        %v1046 = vrot.slane %v1032, %v1045
        %v1047 = vcombine.high %v1023, 0.0
        %v1048 = vcombine.high %v1030, 0.0
        %v1049 = vcombine.high %v1039, 0.0
        %v1050 = vcombine.high %v1046, 0.0
        %v1051 = vcombine.low %v1023, %v1030
        %v1053 = vunpack.c.l.s4 1983009808
        %v1054 = vunpack.c.0.s8 %v1053
        %v1055 = vlaneseq
        %v1056 = vshrl.u32 %v1055, 7
        %v1057 = vsub.s32 %v1054, %v1056
        %v1058 = vrot.slane %v1051, %v1057
        %v1059 = vcombine.low %v1047, %v1048
        %v1061 = vunpack.c.l.s4 1983009808
        %v1062 = vunpack.c.0.s8 %v1061
        %v1063 = vlaneseq
        %v1064 = vshrl.u32 %v1063, 7
        %v1065 = vsub.s32 %v1062, %v1064
        %v1066 = vrot.slane %v1059, %v1065
        %v1067 = vcombine.low %v1039, %v1046
        %v1069 = vunpack.c.l.s4 1983009808
        %v1070 = vunpack.c.0.s8 %v1069
        %v1071 = vlaneseq
        %v1072 = vshrl.u32 %v1071, 7
        %v1073 = vsub.s32 %v1070, %v1072
        %v1074 = vrot.slane %v1067, %v1073
        %v1075 = vcombine.low %v1049, %v1050
        %v1077 = vunpack.c.l.s4 1983009808
        %v1078 = vunpack.c.0.s8 %v1077
        %v1079 = vlaneseq
        %v1080 = vshrl.u32 %v1079, 7
        %v1081 = vsub.s32 %v1078, %v1080
        %v1082 = vrot.slane %v1075, %v1081
        %v1083 = vcombine.low %v1058, %v1066
        %v1084 = vcombine.high %v1058, %v1066
        %v1086 = vunpack.c.l.s4 1934713408
        %v1087 = vunpack.c.0.s8 %v1086
        %v1088 = vlaneseq
        %v1089 = vshrl.u32 %v1088, 7
        %v1090 = vsub.s32 %v1087, %v1089
        %v1091 = vrot.slane %v1083, %v1090
        %v1093 = vunpack.c.l.s4 1934713408
        %v1094 = vunpack.c.0.s8 %v1093
        %v1095 = vlaneseq
        %v1096 = vshrl.u32 %v1095, 7
        %v1097 = vsub.s32 %v1094, %v1096
        %v1098 = vrot.slane %v1084, %v1097
        %v1099 = vcombine.low %v1074, %v1082
        %v1100 = vcombine.high %v1074, %v1082
        %v1102 = vunpack.c.l.s4 1934713408
        %v1103 = vunpack.c.0.s8 %v1102
        %v1104 = vlaneseq
        %v1105 = vshrl.u32 %v1104, 7
        %v1106 = vsub.s32 %v1103, %v1105
        %v1107 = vrot.slane %v1099, %v1106
        %v1109 = vunpack.c.l.s4 1934713408
        %v1110 = vunpack.c.0.s8 %v1109
        %v1111 = vlaneseq
        %v1112 = vshrl.u32 %v1111, 7
        %v1113 = vsub.s32 %v1110, %v1112
        %v1114 = vrot.slane %v1100, %v1113
        %v1115 = vcombine.low %v1091, %v1107
        %v1116 = vcombine.high %v1091, %v1107
        %v1117 = vcombine.low %v1098, %v1114
        %v1118 = vcombine.high %v1098, %v1114
        %v1119 = vpack.c.bf16 %v1115, %v1115
        %v1120 = vpack.c.bf16 %v1116, %v1116
        %v1121 = vpack.c.bf16 %v1117, %v1117
        %v1122 = vpack.c.bf16 %v1118, %v1118
        %v1123 = vld [vmem:[#allocation2] sm:$0xf]
        %v1124 = vld [vmem:[#allocation2 + $0x4] sm:$0xf]
        %v1125 = vld [vmem:[#allocation2 + $0x8] sm:$0xf]
        %v1126 = vld [vmem:[#allocation2 + $0xc] sm:$0xf]
        %v1127 = vld [vmem:[#allocation3] sm:$0xf]
        %v1128 = vld [vmem:[#allocation3 + $0x4] sm:$0xf]
        %v1129 = vld [vmem:[#allocation3 + $0x8] sm:$0xf]
        %v1130 = vld [vmem:[#allocation3 + $0xc] sm:$0xf]
        %vm1131 = vcmask 261120
        %v1133 = vsel %vm1131, %v1119, 0
        %v1136 = vsel %vm1131, %v1123, 0
        %1138 = vmatprep.subr.bf16.mxu0 0
        %1139 = vmatpush1.bf16.xpose.msra.mxu0 %v1136
        %1140 = vmatprep.subr.bf16.mxu0 0
        %1141 = vmatpush1.bf16.xpose.msra.mxu0 0
        %1142 = vmatprep.subr.bf16.mxu0 0
        %1143 = vmatpush1.bf16.xpose.msra.mxu0 0
        %1144 = vmatprep.subr.bf16.mxu0 0
        %1145 = vmatpush1.bf16.xpose.msra.mxu0 0
        %1146 = vmatprep.subr.bf16.mxu0 0
        %1147 = vmatpush1.bf16.xpose.msra.mxu0 0
        %1148 = vmatprep.subr.bf16.mxu0 0
        %1149 = vmatpush1.bf16.xpose.msra.mxu0 0
        %1150 = vmatprep.subr.bf16.mxu0 0
        %1151 = vmatpush1.bf16.xpose.msra.mxu0 0
        %1152 = vmatprep.subr.bf16.mxu0 0
        %1153 = vmatpush1.bf16.xpose.msra.mxu0 0
        %1154 = vmatprep.subr.bf16.mxu0 0
        %1155 = vmatpush1.bf16.xpose.msra.mxu0 0
        %1156 = vmatprep.subr.bf16.mxu0 0
        %1157 = vmatpush1.bf16.xpose.msra.mxu0 0
        %1158 = vmatprep.subr.bf16.mxu0 0
        %1159 = vmatpush1.bf16.xpose.msra.mxu0 0
        %1160 = vmatprep.subr.bf16.mxu0 0
        %1161 = vmatpush1.bf16.xpose.msra.mxu0 0
        %1162 = vmatprep.subr.bf16.mxu0 0
        %1163 = vmatpush1.bf16.xpose.msra.mxu0 0
        %1164 = vmatprep.subr.bf16.mxu0 0
        %1165 = vmatpush1.bf16.xpose.msra.mxu0 0
        %1166 = vmatprep.subr.bf16.mxu0 0
        %1167 = vmatpush1.bf16.xpose.msra.mxu0 0
        %1168 = vmatprep.subr.bf16.mxu0 0
        %1169 = vmatpush1.bf16.xpose.msra.mxu0 0
        %1170 = vmatprep.mubr.bf16.mxu0 0
        %1171 = vmatmul.mubr.bf16.gmra.mrb[0].mxu0 %v1133
        %v1172 = vpop.f32.mrb[0].mxu0
        %v1173 = vadd.f32 0.0, %v1172
        %v1174 = vpop.f32.mrb[0].mxu0
        %v1175 = vpop.f32.mrb[0].mxu0
        %v1176 = vpop.f32.mrb[0].mxu0
        %1177 = vdwg.mxu0
        %v1179 = vsel %vm1131, %v1120, 0
        %v1182 = vsel %vm1131, %v1124, 0
        %1184 = vmatprep.subr.bf16.mxu0 0
        %1185 = vmatpush1.bf16.xpose.msra.mxu0 %v1182
        %1186 = vmatprep.subr.bf16.mxu0 0
        %1187 = vmatpush1.bf16.xpose.msra.mxu0 0
        %1188 = vmatprep.subr.bf16.mxu0 0
        %1189 = vmatpush1.bf16.xpose.msra.mxu0 0
        %1190 = vmatprep.subr.bf16.mxu0 0
        %1191 = vmatpush1.bf16.xpose.msra.mxu0 0
        %1192 = vmatprep.subr.bf16.mxu0 0
        %1193 = vmatpush1.bf16.xpose.msra.mxu0 0
        %1194 = vmatprep.subr.bf16.mxu0 0
        %1195 = vmatpush1.bf16.xpose.msra.mxu0 0
        %1196 = vmatprep.subr.bf16.mxu0 0
        %1197 = vmatpush1.bf16.xpose.msra.mxu0 0
        %1198 = vmatprep.subr.bf16.mxu0 0
        %1199 = vmatpush1.bf16.xpose.msra.mxu0 0
        %1200 = vmatprep.subr.bf16.mxu0 0
        %1201 = vmatpush1.bf16.xpose.msra.mxu0 0
        %1202 = vmatprep.subr.bf16.mxu0 0
        %1203 = vmatpush1.bf16.xpose.msra.mxu0 0
        %1204 = vmatprep.subr.bf16.mxu0 0
        %1205 = vmatpush1.bf16.xpose.msra.mxu0 0
        %1206 = vmatprep.subr.bf16.mxu0 0
        %1207 = vmatpush1.bf16.xpose.msra.mxu0 0
        %1208 = vmatprep.subr.bf16.mxu0 0
        %1209 = vmatpush1.bf16.xpose.msra.mxu0 0
        %1210 = vmatprep.subr.bf16.mxu0 0
        %1211 = vmatpush1.bf16.xpose.msra.mxu0 0
        %1212 = vmatprep.subr.bf16.mxu0 0
        %1213 = vmatpush1.bf16.xpose.msra.mxu0 0
        %1214 = vmatprep.subr.bf16.mxu0 0
        %1215 = vmatpush1.bf16.xpose.msra.mxu0 0
        %1216 = vmatprep.mubr.bf16.mxu0 0
        %1217 = vmatmul.mubr.bf16.gmra.mrb[0].mxu0 %v1179
        %v1218 = vpop.f32.mrb[0].mxu0
        %v1219 = vadd.f32 0.0, %v1218
        %v1220 = vpop.f32.mrb[0].mxu0
        %v1221 = vpop.f32.mrb[0].mxu0
        %v1222 = vpop.f32.mrb[0].mxu0
        %1223 = vdwg.mxu0
        %v1225 = vsel %vm1131, %v1121, 0
        %v1228 = vsel %vm1131, %v1125, 0
        %1230 = vmatprep.subr.bf16.mxu0 0
        %1231 = vmatpush1.bf16.xpose.msra.mxu0 %v1228
        %1232 = vmatprep.subr.bf16.mxu0 0
        %1233 = vmatpush1.bf16.xpose.msra.mxu0 0
        %1234 = vmatprep.subr.bf16.mxu0 0
        %1235 = vmatpush1.bf16.xpose.msra.mxu0 0
        %1236 = vmatprep.subr.bf16.mxu0 0
        %1237 = vmatpush1.bf16.xpose.msra.mxu0 0
        %1238 = vmatprep.subr.bf16.mxu0 0
        %1239 = vmatpush1.bf16.xpose.msra.mxu0 0
        %1240 = vmatprep.subr.bf16.mxu0 0
        %1241 = vmatpush1.bf16.xpose.msra.mxu0 0
        %1242 = vmatprep.subr.bf16.mxu0 0
        %1243 = vmatpush1.bf16.xpose.msra.mxu0 0
        %1244 = vmatprep.subr.bf16.mxu0 0
        %1245 = vmatpush1.bf16.xpose.msra.mxu0 0
        %1246 = vmatprep.subr.bf16.mxu0 0
        %1247 = vmatpush1.bf16.xpose.msra.mxu0 0
        %1248 = vmatprep.subr.bf16.mxu0 0
        %1249 = vmatpush1.bf16.xpose.msra.mxu0 0
        %1250 = vmatprep.subr.bf16.mxu0 0
        %1251 = vmatpush1.bf16.xpose.msra.mxu0 0
        %1252 = vmatprep.subr.bf16.mxu0 0
        %1253 = vmatpush1.bf16.xpose.msra.mxu0 0
        %1254 = vmatprep.subr.bf16.mxu0 0
        %1255 = vmatpush1.bf16.xpose.msra.mxu0 0
        %1256 = vmatprep.subr.bf16.mxu0 0
        %1257 = vmatpush1.bf16.xpose.msra.mxu0 0
        %1258 = vmatprep.subr.bf16.mxu0 0
        %1259 = vmatpush1.bf16.xpose.msra.mxu0 0
        %1260 = vmatprep.subr.bf16.mxu0 0
        %1261 = vmatpush1.bf16.xpose.msra.mxu0 0
        %1262 = vmatprep.mubr.bf16.mxu0 0
        %1263 = vmatmul.mubr.bf16.gmra.mrb[0].mxu0 %v1225
        %v1264 = vpop.f32.mrb[0].mxu0
        %v1265 = vadd.f32 0.0, %v1264
        %v1266 = vpop.f32.mrb[0].mxu0
        %v1267 = vpop.f32.mrb[0].mxu0
        %v1268 = vpop.f32.mrb[0].mxu0
        %1269 = vdwg.mxu0
        %v1271 = vsel %vm1131, %v1122, 0
        %v1274 = vsel %vm1131, %v1126, 0
        %1276 = vmatprep.subr.bf16.mxu0 0
        %1277 = vmatpush1.bf16.xpose.msra.mxu0 %v1274
        %1278 = vmatprep.subr.bf16.mxu0 0
        %1279 = vmatpush1.bf16.xpose.msra.mxu0 0
        %1280 = vmatprep.subr.bf16.mxu0 0
        %1281 = vmatpush1.bf16.xpose.msra.mxu0 0
        %1282 = vmatprep.subr.bf16.mxu0 0
        %1283 = vmatpush1.bf16.xpose.msra.mxu0 0
        %1284 = vmatprep.subr.bf16.mxu0 0
        %1285 = vmatpush1.bf16.xpose.msra.mxu0 0
        %1286 = vmatprep.subr.bf16.mxu0 0
        %1287 = vmatpush1.bf16.xpose.msra.mxu0 0
        %1288 = vmatprep.subr.bf16.mxu0 0
        %1289 = vmatpush1.bf16.xpose.msra.mxu0 0
        %1290 = vmatprep.subr.bf16.mxu0 0
        %1291 = vmatpush1.bf16.xpose.msra.mxu0 0
        %1292 = vmatprep.subr.bf16.mxu0 0
        %1293 = vmatpush1.bf16.xpose.msra.mxu0 0
        %1294 = vmatprep.subr.bf16.mxu0 0
        %1295 = vmatpush1.bf16.xpose.msra.mxu0 0
        %1296 = vmatprep.subr.bf16.mxu0 0
        %1297 = vmatpush1.bf16.xpose.msra.mxu0 0
        %1298 = vmatprep.subr.bf16.mxu0 0
        %1299 = vmatpush1.bf16.xpose.msra.mxu0 0
        %1300 = vmatprep.subr.bf16.mxu0 0
        %1301 = vmatpush1.bf16.xpose.msra.mxu0 0
        %1302 = vmatprep.subr.bf16.mxu0 0
        %1303 = vmatpush1.bf16.xpose.msra.mxu0 0
        %1304 = vmatprep.subr.bf16.mxu0 0
        %1305 = vmatpush1.bf16.xpose.msra.mxu0 0
        %1306 = vmatprep.subr.bf16.mxu0 0
        %1307 = vmatpush1.bf16.xpose.msra.mxu0 0
        %1308 = vmatprep.mubr.bf16.mxu0 0
        %1309 = vmatmul.mubr.bf16.gmra.mrb[0].mxu0 %v1271
        %v1310 = vpop.f32.mrb[0].mxu0
        %v1311 = vadd.f32 0.0, %v1310
        %v1312 = vpop.f32.mrb[0].mxu0
        %v1313 = vpop.f32.mrb[0].mxu0
        %v1314 = vpop.f32.mrb[0].mxu0
        %1315 = vdwg.mxu0
        %v1316 = vlaneseq
        %v1317 = vshrl.u32 %v1316, 7
        %v1318 = vstv %s862
        %v1319 = vadd.s32 %v1317, %v1318
        %v1320 = vlaneseq
        %v1321 = vand.u32 %v1320, 127
        %vm1322 = vcmp.ge.s32.totalorder %v1319, %v1321
        %v1323 = vsel %vm1322, 1, 0
        %vm1324 = vcmp.eq.s32.totalorder %v1323, 1
        %v1325 = vsel %vm1324, %v1173, -1e+30
        %v1326 = vsel %vm1324, %v1219, -1e+30
        %v1327 = vsel %vm1324, %v1265, -1e+30
        %v1328 = vsel %vm1324, %v1311, -1e+30
        %vm1329 = vcmask 64512
        %v1330 = vsel %vm1329, %v1325, -inf
        %1331 = vmax.xlane.f32.xlu0 %v1330
        %v1332 = vpop.xlane.xlu0 %1331
        %v1333 = vsel %vm1329, %v1326, -inf
        %1334 = vmax.xlane.f32.xlu0 %v1333
        %v1335 = vpop.xlane.xlu0 %1334
        %v1336 = vsel %vm1329, %v1327, -inf
        %1337 = vmax.xlane.f32.xlu0 %v1336
        %v1338 = vpop.xlane.xlu0 %1337
        %v1339 = vsel %vm1329, %v1328, -inf
        %1340 = vmax.xlane.f32.xlu0 %v1339
        %v1341 = vpop.xlane.xlu0 %1340
        %v1342 = vsub.f32 %v1325, %v1332
        %v1343 = vsub.f32 %v1326, %v1335
        %v1344 = vsub.f32 %v1327, %v1338
        %v1345 = vsub.f32 %v1328, %v1341
        %v1346 = vmul.f32 %v1342, 1.442695
        %v1347 = vpow.pop %v1346
        %v1348 = vmul.f32 %v1343, 1.442695
        %v1349 = vpow.pop %v1348
        %v1350 = vmul.f32 %v1344, 1.442695
        %v1351 = vpow.pop %v1350
        %v1352 = vmul.f32 %v1345, 1.442695
        %v1353 = vpow.pop %v1352
        %v1354 = vsel %vm1329, %v1347, 0.0
        %1355 = vadd.xlane.f32.xlu0 %v1354
        %v1356 = vpop.xlane.xlu0 %1355
        %v1357 = vsel %vm1329, %v1349, 0.0
        %1358 = vadd.xlane.f32.xlu0 %v1357
        %v1359 = vpop.xlane.xlu0 %1358
        %v1360 = vsel %vm1329, %v1351, 0.0
        %1361 = vadd.xlane.f32.xlu0 %v1360
        %v1362 = vpop.xlane.xlu0 %1361
        %v1363 = vsel %vm1329, %v1353, 0.0
        %1364 = vadd.xlane.f32.xlu0 %v1363
        %v1365 = vpop.xlane.xlu0 %1364
        %v1366 = vpack.c.bf16 %v1347, %v1347
        %v1367 = vpack.c.bf16 %v1349, %v1349
        %v1368 = vpack.c.bf16 %v1351, %v1351
        %v1369 = vpack.c.bf16 %v1353, %v1353
        %v1371 = vsel %vm1329, %v1366, 0
        %vm1373 = vcmask 1043456
        %v1375 = vsel %vm1373, %v1127, 0
        %1377 = vmatprep.subr.bf16.mxu0 0
        %1378 = vmatpush1.bf16.msra.mxu0 %v1375
        %1379 = vmatprep.subr.bf16.mxu0 0
        %1380 = vmatpush1.bf16.msra.mxu0 0
        %1381 = vmatprep.subr.bf16.mxu0 0
        %1382 = vmatpush1.bf16.msra.mxu0 0
        %1383 = vmatprep.subr.bf16.mxu0 0
        %1384 = vmatpush1.bf16.msra.mxu0 0
        %1385 = vmatprep.subr.bf16.mxu0 0
        %1386 = vmatpush1.bf16.msra.mxu0 0
        %1387 = vmatprep.subr.bf16.mxu0 0
        %1388 = vmatpush1.bf16.msra.mxu0 0
        %1389 = vmatprep.subr.bf16.mxu0 0
        %1390 = vmatpush1.bf16.msra.mxu0 0
        %1391 = vmatprep.subr.bf16.mxu0 0
        %1392 = vmatpush1.bf16.msra.mxu0 0
        %1393 = vmatprep.subr.bf16.mxu0 0
        %1394 = vmatpush1.bf16.msra.mxu0 0
        %1395 = vmatprep.subr.bf16.mxu0 0
        %1396 = vmatpush1.bf16.msra.mxu0 0
        %1397 = vmatprep.subr.bf16.mxu0 0
        %1398 = vmatpush1.bf16.msra.mxu0 0
        %1399 = vmatprep.subr.bf16.mxu0 0
        %1400 = vmatpush1.bf16.msra.mxu0 0
        %1401 = vmatprep.subr.bf16.mxu0 0
        %1402 = vmatpush1.bf16.msra.mxu0 0
        %1403 = vmatprep.subr.bf16.mxu0 0
        %1404 = vmatpush1.bf16.msra.mxu0 0
        %1405 = vmatprep.subr.bf16.mxu0 0
        %1406 = vmatpush1.bf16.msra.mxu0 0
        %1407 = vmatprep.subr.bf16.mxu0 0
        %1408 = vmatpush1.bf16.msra.mxu0 0
        %1409 = vmatprep.mubr.bf16.mxu0 0
        %1410 = vmatmul.mubr.bf16.gmra.mrb[0].mxu0 %v1371
        %v1411 = vpop.f32.mrb[0].mxu0
        %v1412 = vadd.f32 0.0, %v1411
        %v1413 = vpop.f32.mrb[0].mxu0
        %v1414 = vpop.f32.mrb[0].mxu0
        %v1415 = vpop.f32.mrb[0].mxu0
        %1416 = vdwg.mxu0
        %v1418 = vsel %vm1329, %v1367, 0
        %v1421 = vsel %vm1373, %v1128, 0
        %1423 = vmatprep.subr.bf16.mxu0 0
        %1424 = vmatpush1.bf16.msra.mxu0 %v1421
        %1425 = vmatprep.subr.bf16.mxu0 0
        %1426 = vmatpush1.bf16.msra.mxu0 0
        %1427 = vmatprep.subr.bf16.mxu0 0
        %1428 = vmatpush1.bf16.msra.mxu0 0
        %1429 = vmatprep.subr.bf16.mxu0 0
        %1430 = vmatpush1.bf16.msra.mxu0 0
        %1431 = vmatprep.subr.bf16.mxu0 0
        %1432 = vmatpush1.bf16.msra.mxu0 0
        %1433 = vmatprep.subr.bf16.mxu0 0
        %1434 = vmatpush1.bf16.msra.mxu0 0
        %1435 = vmatprep.subr.bf16.mxu0 0
        %1436 = vmatpush1.bf16.msra.mxu0 0
        %1437 = vmatprep.subr.bf16.mxu0 0
        %1438 = vmatpush1.bf16.msra.mxu0 0
        %1439 = vmatprep.subr.bf16.mxu0 0
        %1440 = vmatpush1.bf16.msra.mxu0 0
        %1441 = vmatprep.subr.bf16.mxu0 0
        %1442 = vmatpush1.bf16.msra.mxu0 0
        %1443 = vmatprep.subr.bf16.mxu0 0
        %1444 = vmatpush1.bf16.msra.mxu0 0
        %1445 = vmatprep.subr.bf16.mxu0 0
        %1446 = vmatpush1.bf16.msra.mxu0 0
        %1447 = vmatprep.subr.bf16.mxu0 0
        %1448 = vmatpush1.bf16.msra.mxu0 0
        %1449 = vmatprep.subr.bf16.mxu0 0
        %1450 = vmatpush1.bf16.msra.mxu0 0
        %1451 = vmatprep.subr.bf16.mxu0 0
        %1452 = vmatpush1.bf16.msra.mxu0 0
        %1453 = vmatprep.subr.bf16.mxu0 0
        %1454 = vmatpush1.bf16.msra.mxu0 0
        %1455 = vmatprep.mubr.bf16.mxu0 0
        %1456 = vmatmul.mubr.bf16.gmra.mrb[0].mxu0 %v1418
        %v1457 = vpop.f32.mrb[0].mxu0
        %v1458 = vadd.f32 0.0, %v1457
        %v1459 = vpop.f32.mrb[0].mxu0
        %v1460 = vpop.f32.mrb[0].mxu0
        %v1461 = vpop.f32.mrb[0].mxu0
        %1462 = vdwg.mxu0
        %v1464 = vsel %vm1329, %v1368, 0
        %v1467 = vsel %vm1373, %v1129, 0
        %1469 = vmatprep.subr.bf16.mxu0 0
        %1470 = vmatpush1.bf16.msra.mxu0 %v1467
        %1471 = vmatprep.subr.bf16.mxu0 0
        %1472 = vmatpush1.bf16.msra.mxu0 0
        %1473 = vmatprep.subr.bf16.mxu0 0
        %1474 = vmatpush1.bf16.msra.mxu0 0
        %1475 = vmatprep.subr.bf16.mxu0 0
        %1476 = vmatpush1.bf16.msra.mxu0 0
        %1477 = vmatprep.subr.bf16.mxu0 0
        %1478 = vmatpush1.bf16.msra.mxu0 0
        %1479 = vmatprep.subr.bf16.mxu0 0
        %1480 = vmatpush1.bf16.msra.mxu0 0
        %1481 = vmatprep.subr.bf16.mxu0 0
        %1482 = vmatpush1.bf16.msra.mxu0 0
        %1483 = vmatprep.subr.bf16.mxu0 0
        %1484 = vmatpush1.bf16.msra.mxu0 0
        %1485 = vmatprep.subr.bf16.mxu0 0
        %1486 = vmatpush1.bf16.msra.mxu0 0
        %1487 = vmatprep.subr.bf16.mxu0 0
        %1488 = vmatpush1.bf16.msra.mxu0 0
        %1489 = vmatprep.subr.bf16.mxu0 0
        %1490 = vmatpush1.bf16.msra.mxu0 0
        %1491 = vmatprep.subr.bf16.mxu0 0
        %1492 = vmatpush1.bf16.msra.mxu0 0
        %1493 = vmatprep.subr.bf16.mxu0 0
        %1494 = vmatpush1.bf16.msra.mxu0 0
        %1495 = vmatprep.subr.bf16.mxu0 0
        %1496 = vmatpush1.bf16.msra.mxu0 0
        %1497 = vmatprep.subr.bf16.mxu0 0
        %1498 = vmatpush1.bf16.msra.mxu0 0
        %1499 = vmatprep.subr.bf16.mxu0 0
        %1500 = vmatpush1.bf16.msra.mxu0 0
        %1501 = vmatprep.mubr.bf16.mxu0 0
        %1502 = vmatmul.mubr.bf16.gmra.mrb[0].mxu0 %v1464
        %v1503 = vpop.f32.mrb[0].mxu0
        %v1504 = vadd.f32 0.0, %v1503
        %v1505 = vpop.f32.mrb[0].mxu0
        %v1506 = vpop.f32.mrb[0].mxu0
        %v1507 = vpop.f32.mrb[0].mxu0
        %1508 = vdwg.mxu0
        %v1510 = vsel %vm1329, %v1369, 0
        %v1513 = vsel %vm1373, %v1130, 0
        %1515 = vmatprep.subr.bf16.mxu0 0
        %1516 = vmatpush1.bf16.msra.mxu0 %v1513
        %1517 = vmatprep.subr.bf16.mxu0 0
        %1518 = vmatpush1.bf16.msra.mxu0 0
        %1519 = vmatprep.subr.bf16.mxu0 0
        %1520 = vmatpush1.bf16.msra.mxu0 0
        %1521 = vmatprep.subr.bf16.mxu0 0
        %1522 = vmatpush1.bf16.msra.mxu0 0
        %1523 = vmatprep.subr.bf16.mxu0 0
        %1524 = vmatpush1.bf16.msra.mxu0 0
        %1525 = vmatprep.subr.bf16.mxu0 0
        %1526 = vmatpush1.bf16.msra.mxu0 0
        %1527 = vmatprep.subr.bf16.mxu0 0
        %1528 = vmatpush1.bf16.msra.mxu0 0
        %1529 = vmatprep.subr.bf16.mxu0 0
        %1530 = vmatpush1.bf16.msra.mxu0 0
        %1531 = vmatprep.subr.bf16.mxu0 0
        %1532 = vmatpush1.bf16.msra.mxu0 0
        %1533 = vmatprep.subr.bf16.mxu0 0
        %1534 = vmatpush1.bf16.msra.mxu0 0
        %1535 = vmatprep.subr.bf16.mxu0 0
        %1536 = vmatpush1.bf16.msra.mxu0 0
        %1537 = vmatprep.subr.bf16.mxu0 0
        %1538 = vmatpush1.bf16.msra.mxu0 0
        %1539 = vmatprep.subr.bf16.mxu0 0
        %1540 = vmatpush1.bf16.msra.mxu0 0
        %1541 = vmatprep.subr.bf16.mxu0 0
        %1542 = vmatpush1.bf16.msra.mxu0 0
        %1543 = vmatprep.subr.bf16.mxu0 0
        %1544 = vmatpush1.bf16.msra.mxu0 0
        %1545 = vmatprep.subr.bf16.mxu0 0
        %1546 = vmatpush1.bf16.msra.mxu0 0
        %1547 = vmatprep.mubr.bf16.mxu0 0
        %1548 = vmatmul.mubr.bf16.gmra.mrb[0].mxu0 %v1510
        %v1549 = vpop.f32.mrb[0].mxu0
        %v1550 = vadd.f32 0.0, %v1549
        %v1551 = vpop.f32.mrb[0].mxu0
        %v1552 = vpop.f32.mrb[0].mxu0
        %v1553 = vpop.f32.mrb[0].mxu0
        %1554 = vdwg.mxu0
        %v1555 = vrcp.pop %v1356
        %v1556 = vrcp.pop %v1359
        %v1557 = vrcp.pop %v1362
        %v1558 = vrcp.pop %v1365
        %v1559 = vmul.f32 %v1412, %v1555
        %v1560 = vmul.f32 %v1458, %v1556
        %v1561 = vmul.f32 %v1504, %v1557
        %v1562 = vmul.f32 %v1550, %v1558
        %v1563 = vcombine.low %v1559, %v1561
        %v1564 = vcombine.high %v1559, %v1561
        %v1566 = vunpack.c.l.s4 1983009808
        %v1567 = vunpack.c.0.s8 %v1566
        %v1568 = vlaneseq
        %v1569 = vshrl.u32 %v1568, 7
        %v1570 = vsub.s32 %v1567, %v1569
        %v1571 = vrot.slane %v1563, %v1570
        %v1573 = vunpack.c.l.s4 1983009808
        %v1574 = vunpack.c.0.s8 %v1573
        %v1575 = vlaneseq
        %v1576 = vshrl.u32 %v1575, 7
        %v1577 = vsub.s32 %v1574, %v1576
        %v1578 = vrot.slane %v1564, %v1577
        %v1579 = vcombine.low %v1560, %v1562
        %v1580 = vcombine.high %v1560, %v1562
        %v1582 = vunpack.c.l.s4 1983009808
        %v1583 = vunpack.c.0.s8 %v1582
        %v1584 = vlaneseq
        %v1585 = vshrl.u32 %v1584, 7
        %v1586 = vsub.s32 %v1583, %v1585
        %v1587 = vrot.slane %v1579, %v1586
        %v1589 = vunpack.c.l.s4 1983009808
        %v1590 = vunpack.c.0.s8 %v1589
        %v1591 = vlaneseq
        %v1592 = vshrl.u32 %v1591, 7
        %v1593 = vsub.s32 %v1590, %v1592
        %v1594 = vrot.slane %v1580, %v1593
        %v1595 = vcombine.low %v1571, %v1587
        %v1596 = vcombine.high %v1571, %v1587
        %v1598 = vunpack.c.l.s4 1934713408
        %v1599 = vunpack.c.0.s8 %v1598
        %v1600 = vlaneseq
        %v1601 = vshrl.u32 %v1600, 7
        %v1602 = vsub.s32 %v1599, %v1601
        %v1603 = vrot.slane %v1595, %v1602
        %v1605 = vunpack.c.l.s4 1934713408
        %v1606 = vunpack.c.0.s8 %v1605
        %v1607 = vlaneseq
        %v1608 = vshrl.u32 %v1607, 7
        %v1609 = vsub.s32 %v1606, %v1608
        %v1610 = vrot.slane %v1596, %v1609
        %v1611 = vcombine.low %v1578, %v1594
        %v1612 = vcombine.high %v1578, %v1594
        %v1614 = vunpack.c.l.s4 1934713408
        %v1615 = vunpack.c.0.s8 %v1614
        %v1616 = vlaneseq
        %v1617 = vshrl.u32 %v1616, 7
        %v1618 = vsub.s32 %v1615, %v1617
        %v1619 = vrot.slane %v1611, %v1618
        %v1621 = vunpack.c.l.s4 1934713408
        %v1622 = vunpack.c.0.s8 %v1621
        %v1623 = vlaneseq
        %v1624 = vshrl.u32 %v1623, 7
        %v1625 = vsub.s32 %v1622, %v1624
        %v1626 = vrot.slane %v1612, %v1625
        %v1627 = vcombine.high %v1603, 0.0
        %v1628 = vcombine.high %v1610, 0.0
        %v1629 = vcombine.high %v1619, 0.0
        %v1630 = vcombine.high %v1626, 0.0
        %v1631 = vcombine.low %v1603, %v1610
        %v1633 = vunpack.c.l.s4 1983009808
        %v1634 = vunpack.c.0.s8 %v1633
        %v1635 = vlaneseq
        %v1636 = vshrl.u32 %v1635, 7
        %v1637 = vsub.s32 %v1634, %v1636
        %v1638 = vrot.slane %v1631, %v1637
        %v1639 = vcombine.low %v1627, %v1628
        %v1641 = vunpack.c.l.s4 1983009808
        %v1642 = vunpack.c.0.s8 %v1641
        %v1643 = vlaneseq
        %v1644 = vshrl.u32 %v1643, 7
        %v1645 = vsub.s32 %v1642, %v1644
        %v1646 = vrot.slane %v1639, %v1645
        %v1647 = vcombine.low %v1619, %v1626
        %v1649 = vunpack.c.l.s4 1983009808
        %v1650 = vunpack.c.0.s8 %v1649
        %v1651 = vlaneseq
        %v1652 = vshrl.u32 %v1651, 7
        %v1653 = vsub.s32 %v1650, %v1652
        %v1654 = vrot.slane %v1647, %v1653
        %v1655 = vcombine.low %v1629, %v1630
        %v1657 = vunpack.c.l.s4 1983009808
        %v1658 = vunpack.c.0.s8 %v1657
        %v1659 = vlaneseq
        %v1660 = vshrl.u32 %v1659, 7
        %v1661 = vsub.s32 %v1658, %v1660
        %v1662 = vrot.slane %v1655, %v1661
        %v1663 = vcombine.low %v1638, %v1646
        %v1664 = vcombine.high %v1638, %v1646
        %v1666 = vunpack.c.l.s4 1934713408
        %v1667 = vunpack.c.0.s8 %v1666
        %v1668 = vlaneseq
        %v1669 = vshrl.u32 %v1668, 7
        %v1670 = vsub.s32 %v1667, %v1669
        %v1671 = vrot.slane %v1663, %v1670
        %v1673 = vunpack.c.l.s4 1934713408
        %v1674 = vunpack.c.0.s8 %v1673
        %v1675 = vlaneseq
        %v1676 = vshrl.u32 %v1675, 7
        %v1677 = vsub.s32 %v1674, %v1676
        %v1678 = vrot.slane %v1664, %v1677
        %v1679 = vcombine.low %v1654, %v1662
        %v1680 = vcombine.high %v1654, %v1662
        %v1682 = vunpack.c.l.s4 1934713408
        %v1683 = vunpack.c.0.s8 %v1682
        %v1684 = vlaneseq
        %v1685 = vshrl.u32 %v1684, 7
        %v1686 = vsub.s32 %v1683, %v1685
        %v1687 = vrot.slane %v1679, %v1686
        %v1689 = vunpack.c.l.s4 1934713408
        %v1690 = vunpack.c.0.s8 %v1689
        %v1691 = vlaneseq
        %v1692 = vshrl.u32 %v1691, 7
        %v1693 = vsub.s32 %v1690, %v1692
        %v1694 = vrot.slane %v1680, %v1693
        %v1695 = vcombine.low %v1671, %v1687
        %v1696 = vcombine.high %v1671, %v1687
        %v1697 = vcombine.low %v1678, %v1694
        %v1698 = vcombine.high %v1678, %v1694
        %1700 = vrot.lane.b32.xlu0 %v1696, 32
        %v1701 = vpop.permute.xlu0 %1700
        %1704 = vrot.lane.b32.xlu0 %v1697, 64
        %v1705 = vpop.permute.xlu0 %1704
        %1708 = vrot.lane.b32.xlu0 %v1698, 96
        %v1709 = vpop.permute.xlu0 %1708
        %v1711 = vsel %vm1131, %v1695, %v1701
        %vm1712 = vcmask 523264
        %v1713 = vsel %vm1712, %v1711, %v1705
        %vm1714 = vcmask 785408
        %v1715 = vsel %vm1714, %v1713, %v1709
        %v1716 = vpack.c.bf16 %v1715, %v1715
        %v1717 = vld [vmem:[#allocation12] sm:$0xf]
        %v1718 = vld [vmem:[#allocation12 + $0x4] sm:$0xf]
        %v1719 = vld [vmem:[#allocation12 + $0x8] sm:$0xf]
        %v1720 = vld [vmem:[#allocation12 + $0xc] sm:$0xf]
        %v1721 = vld [vmem:[#allocation12 + $0x10] sm:$0xf]
        %v1722 = vld [vmem:[#allocation12 + $0x14] sm:$0xf]
        %v1723 = vld [vmem:[#allocation12 + $0x18] sm:$0xf]
        %v1724 = vld [vmem:[#allocation12 + $0x1c] sm:$0xf]
        %v1725 = vld [vmem:[#allocation12 + $0x20] sm:$0xf]
        %v1726 = vld [vmem:[#allocation12 + $0x24] sm:$0xf]
        %v1727 = vld [vmem:[#allocation12 + $0x28] sm:$0xf]
        %v1728 = vld [vmem:[#allocation12 + $0x2c] sm:$0xf]
        %v1729 = vld [vmem:[#allocation12 + $0x30] sm:$0xf]
        %v1730 = vld [vmem:[#allocation12 + $0x34] sm:$0xf]
        %v1731 = vld [vmem:[#allocation12 + $0x38] sm:$0xf]
        %v1732 = vld [vmem:[#allocation12 + $0x3c] sm:$0xf]
        %v1733 = vld [vmem:[%s5] sm:$0x1]
        %v1735 = vlaneseq
        %v1736 = vshrl.u32 %v1735, 7
        %v1737 = vsub.s32 0, %v1736
        %v1738 = vrot.slane %v1733, %v1737
        %v1756 = vunpack.c.l.b16 %v1717
        %v1757 = vunpack.c.l.b16 %v1718
        %v1758 = vunpack.c.l.b16 %v1719
        %v1759 = vunpack.c.l.b16 %v1720
        %v1760 = vunpack.c.l.b16 %v1721
        %v1761 = vunpack.c.l.b16 %v1722
        %v1762 = vunpack.c.l.b16 %v1723
        %v1763 = vunpack.c.l.b16 %v1724
        %v1764 = vunpack.c.l.b16 %v1725
        %v1765 = vunpack.c.l.b16 %v1726
        %v1766 = vunpack.c.l.b16 %v1727
        %v1767 = vunpack.c.l.b16 %v1728
        %v1768 = vunpack.c.l.b16 %v1729
        %v1769 = vunpack.c.l.b16 %v1730
        %v1770 = vunpack.c.l.b16 %v1731
        %v1771 = vunpack.c.l.b16 %v1732
        %v1772 = vpack.c.b16 %v1757, %v1756
        %v1773 = vpack.c.b16 %v1759, %v1758
        %v1774 = vpack.c.b16 %v1761, %v1760
        %v1775 = vpack.c.b16 %v1763, %v1762
        %v1776 = vpack.c.b16 %v1765, %v1764
        %v1777 = vpack.c.b16 %v1767, %v1766
        %v1778 = vpack.c.b16 %v1769, %v1768
        %v1779 = vpack.c.b16 %v1771, %v1770
        %1788 = vmatprep.subr.bf16.mxu0 0
        %1789 = vmatpush1.bf16.msra.mxu0 %v1772
        %1790 = vmatprep.subr.bf16.mxu0 0
        %1791 = vmatpush1.bf16.msra.mxu0 %v1773
        %1792 = vmatprep.subr.bf16.mxu0 0
        %1793 = vmatpush1.bf16.msra.mxu0 %v1774
        %1794 = vmatprep.subr.bf16.mxu0 0
        %1795 = vmatpush1.bf16.msra.mxu0 %v1775
        %1796 = vmatprep.subr.bf16.mxu0 0
        %1797 = vmatpush1.bf16.msra.mxu0 %v1776
        %1798 = vmatprep.subr.bf16.mxu0 0
        %1799 = vmatpush1.bf16.msra.mxu0 %v1777
        %1800 = vmatprep.subr.bf16.mxu0 0
        %1801 = vmatpush1.bf16.msra.mxu0 %v1778
        %1802 = vmatprep.subr.bf16.mxu0 0
        %1803 = vmatpush1.bf16.msra.mxu0 %v1779
        %1804 = vmatprep.subr.bf16.mxu0 0
        %1805 = vmatpush1.bf16.msra.mxu0 0
        %1806 = vmatprep.subr.bf16.mxu0 0
        %1807 = vmatpush1.bf16.msra.mxu0 0
        %1808 = vmatprep.subr.bf16.mxu0 0
        %1809 = vmatpush1.bf16.msra.mxu0 0
        %1810 = vmatprep.subr.bf16.mxu0 0
        %1811 = vmatpush1.bf16.msra.mxu0 0
        %1812 = vmatprep.subr.bf16.mxu0 0
        %1813 = vmatpush1.bf16.msra.mxu0 0
        %1814 = vmatprep.subr.bf16.mxu0 0
        %1815 = vmatpush1.bf16.msra.mxu0 0
        %1816 = vmatprep.subr.bf16.mxu0 0
        %1817 = vmatpush1.bf16.msra.mxu0 0
        %1818 = vmatprep.subr.bf16.mxu0 0
        %1819 = vmatpush1.bf16.msra.mxu0 0
        %1820 = vmatprep.mubr.bf16.mxu0 0
        %1821 = vmatmul.mubr.bf16.gmra.mrb[0].mxu0 %v1716
        %v1822 = vpop.f32.mrb[0].mxu0
        %v1823 = vadd.f32 %v1738, %v1822
        %v1824 = vpop.f32.mrb[0].mxu0
        %v1825 = vpop.f32.mrb[0].mxu0
        %v1826 = vpop.f32.mrb[0].mxu0
        %1827 = vdwg.mxu0
        %1828 = vst [vmem:[%s338] sm:$0xff] %v1823
        %s1829 = sand.u32 %s178, 1
        %s1830 = scalar_lea.sflag [#allocation6], %s1829
        %s1831 = sand.u32 %s178, 1
        %s1832 = smul.addr %s1831, 8
        %s1833 = scalar_lea.vmem [#allocation13], %s1832
        // Predicated region
        $region69: #{tpu_custom_call.1} parent=43 // pred_check
          %p1834 = pneg %p188
        $region70: #{tpu_custom_call.1} parent=43 // pred_check_branch
          %1836 = sbr.rel (%p1834) target = $region72
        $region71: #{tpu_custom_call.1} parent=43 // pred_region
          %s1838 = ssub.s32 128, 128
          %1839 = vsyncadd %s1830, %s1838
          %s1840 = sadd.s32 %s30, %s29
          %s1841 = smul.addr %s1840, 128
          %s1842 = scalar_lea.hbm %s6, %s1841
          %s1844 = sshll.u32 %s1833, 4
          %s1845 = int_to_ptr.vmem [resolvable:$true] %s1844
          %1847 = dma.vmem_to_hbm [thread:$0]  %s1845, 128, %s1842, %s1830
        $region72: #{tpu_custom_call.1} parent=43 // pred_fallthru
          _
      $region44: #{tpu_custom_call.1} parent=5 // pred_fallthru
        _
      %p1848 = scmp.le.s32.totalorder 2, %s20
      // Predicated region
      $region73: #{tpu_custom_call.1} parent=5 // pred_check
        %p1849 = pneg %p1848
      $region74: #{tpu_custom_call.1} parent=5 // pred_check_branch
        %1851 = sbr.rel (%p1849) target = $region76
      $region75: #{tpu_custom_call.1} parent=5 // pred_region
        %s1852 = ssub.s32 %s20, 2
        // Predicated region
        $region77: #{tpu_custom_call.1} parent=75 // pred_check
          %p1853 = pneg %p194
        $region78: #{tpu_custom_call.1} parent=75 // pred_check_branch
          %1855 = sbr.rel (%p1853) target = $region80
        $region79: #{tpu_custom_call.1} parent=75 // pred_region
          %s1856 = sand.u32 %s179, 1
          %s1857 = scalar_lea.sflag [#allocation6], %s1856
          %s1858 = sand.u32 %s179, 1
          %s1859 = smul.addr %s1858, 8
          %s1860 = scalar_lea.vmem [#allocation13], %s1859
          %1861 = dma.done %s1857, 128
        $region80: #{tpu_custom_call.1} parent=75 // pred_fallthru
          _
      $region76: #{tpu_custom_call.1} parent=5 // pred_fallthru
        _
    $region6: #{tpu_custom_call.1} parent=1 // loop_footer
      %s24 = sadd.s32 1, %s20
    $region7: #{tpu_custom_call.1} parent=1 // loop_footer_branch
      %19 = sbr.rel target = $region3
    $region8: #{tpu_custom_call.1} parent=1 // loop_exit
      _
    %1862 = vsyncpa [#allocation5], 1
    %s1863 = scalar_lea.sflag [#allocation5], 1
    %1864 = vsyncpa %s1863, 1
    %1865 = vsyncpa [#allocation8], 1
    %1866 = vsyncpa [#allocation11], 1
    %1867 = vsyncpa [#allocation6], 1
    %s1868 = scalar_lea.sflag [#allocation6], 1
    %1869 = vsyncpa %s1868, 1

</llo_original>
